<compile_context>
chip_gen: v5e
topology: v5e:2x2
jax: 0.10.0
libtpu: 0.0.40
codegen_flags: <defaults>
</compile_context>

<pallas_src>
import functools

import jax
import jax.numpy as jnp
from jax import lax
from jax.experimental import pallas as pl
from jax.experimental.pallas import tpu as pltpu

EPS = 1e-5


# ----------------------------- Pallas kernel ------------------------------ #

def _resnet_block_kernel(x_ref, w_ref, bn_ref, mask_ref, out_ref, *, H, W):
    """Fully fused ResNetBlock forward for the whole batch (single grid step).

    x_ref    : (N, C, H*W)  f32   input, channels on sublanes, HW on lanes
    w_ref    : (18, C, C)   f32   conv weights, [layer*9 + tap, Cout, Cin]
    bn_ref   : (C, 4)       f32   columns [gamma1, beta1, gamma2, beta2]
    mask_ref : (9, N*H*W)   f32   per-tap "same"-padding validity masks
    out_ref  : (N, C, H*W)  f32   output
    """
    N, C, HW = x_ref.shape
    L = N * HW
    inv_cnt = 1.0 / L

    # Stack the batch along lanes (split points are multiples of 128).
    x = jnp.concatenate([x_ref[n] for n in range(N)], axis=1)       # (C, L) f32

    bn = bn_ref[...]                                                # (C, 4)
    masks = mask_ref[...]                                           # (9, L)

    def bn_relu_conv3x3(inp, layer):
        # BatchNorm2d, training-mode batch stats over (N, H, W) == all lanes.
        mean = jnp.sum(inp, axis=1, keepdims=True) * inv_cnt        # (C, 1)
        cen = inp - mean
        var = jnp.sum(cen * cen, axis=1, keepdims=True) * inv_cnt   # biased
        gamma = bn[:, 2 * layer:2 * layer + 1]                      # (C, 1)
        beta = bn[:, 2 * layer + 1:2 * layer + 2]                   # (C, 1)
        act = jnp.maximum(cen * (gamma * lax.rsqrt(var + EPS)) + beta, 0.0)

        # 3x3 "same" conv (no bias): lane rolls + precomputed edge masks,
        # 9 accumulating MXU dots (no sublane-tile-straddling concat).
        # rolled[p] == act[p + dy*W + dx]; the mask zeroes out-of-image taps,
        # including any cross-image / wrap-around bleed from the roll.
        acc = jnp.zeros((C, L), jnp.float32)
        for tap in range(9):                                        # static
            dy, dx = tap // 3 - 1, tap % 3 - 1
            s = dy * W + dx
            rolled = act if s == 0 else pltpu.roll(act, (-s) % L, 1)
            tapped = (rolled * masks[tap:tap + 1, :]).astype(jnp.bfloat16)
            w_tap = w_ref[layer * 9 + tap].astype(jnp.bfloat16)     # (C, C)
            acc = acc + jnp.dot(w_tap, tapped,
                                preferred_element_type=jnp.float32)
        return acc

    h = bn_relu_conv3x3(x, 0)
    out = x + bn_relu_conv3x3(h, 1)                                 # residual

    # Split back per image along lanes (128-aligned slices -> unmasked stores).
    for n in range(N):
        out_ref[n] = out[:, n * HW:(n + 1) * HW].astype(out_ref.dtype)


# ------------------------------ wrappers ----------------------------------- #

def prepare_params(params, N, H, W):
    """One-time (outside jit) packing of weights, BN affines and edge masks."""
    C = params["gamma1"].shape[0]
    HW = H * W

    # OIHW -> (layer*9 + tap, Cout, Cin), tap = (ky)*3 + (kx).
    w = jnp.stack([params["w1_oihw"], params["w2_oihw"]])           # (2,C,C,3,3)
    w = jnp.transpose(w, (0, 3, 4, 1, 2)).reshape(18, C, C)

    bn = jnp.stack([params["gamma1"], params["beta1"],
                    params["gamma2"], params["beta2"]], axis=1)     # (C, 4)

    hw = jnp.arange(HW)
    h_idx, w_idx = hw // W, hw % W
    rows = []
    for tap in range(9):
        dy, dx = tap // 3 - 1, tap % 3 - 1
        rows.append((h_idx + dy >= 0) & (h_idx + dy < H) &
                    (w_idx + dx >= 0) & (w_idx + dx < W))
    masks = jnp.tile(jnp.stack(rows).astype(jnp.float32), (1, N))   # (9, N*HW)

    return {"w": w.astype(jnp.float32),
            "bn": bn.astype(jnp.float32),
            "masks": masks}


def resnet_block_pallas(x_nchw, prep):
    N, C, H, W = x_nchw.shape
    HW = H * W
    L = N * HW
    x = x_nchw.reshape(N, C, HW).astype(jnp.float32)     # free reshape (NCHW)

    kernel = functools.partial(_resnet_block_kernel, H=H, W=W)
    out = pl.pallas_call(
        kernel,
        out_shape=jax.ShapeDtypeStruct((N, C, HW), jnp.float32),
        grid_spec=pltpu.PrefetchScalarGridSpec(
            num_scalar_prefetch=0,
            grid=(1,),
            in_specs=[
                pl.BlockSpec((N, C, HW), lambda i: (0, 0, 0)),
                pl.BlockSpec((18, C, C), lambda i: (0, 0, 0)),
                pl.BlockSpec((C, 4), lambda i: (0, 0)),
                pl.BlockSpec((9, L), lambda i: (0, 0)),
            ],
            out_specs=pl.BlockSpec((N, C, HW), lambda i: (0, 0, 0)),
        ),
        compiler_params=pltpu.CompilerParams(
            dimension_semantics=("arbitrary",)),
    )(x, prep["w"], prep["bn"], prep["masks"])
    return out.reshape(N, C, H, W)                        # free reshape back


# ------------------- pure-JAX reference (verification) --------------------- #

def _bnconv_ref(x_nchw, gamma, beta, w_oihw):
    mean = jnp.mean(x_nchw, axis=(0, 2, 3))
    var = jnp.var(x_nchw, axis=(0, 2, 3))                 # biased, BN training
    scale = gamma / jnp.sqrt(var + EPS)
    shift = beta - mean * scale
    act = jnp.maximum(
        x_nchw * scale.reshape(1, -1, 1, 1) + shift.reshape(1, -1, 1, 1), 0.0)
    return lax.conv_general_dilated(
        act, w_oihw, window_strides=(1, 1), padding="SAME",
        dimension_numbers=("NCHW", "OIHW", "NCHW"),
        precision=lax.Precision.HIGHEST)


def resnet_block_ref(x_nchw, params):
    h = _bnconv_ref(x_nchw, params["gamma1"], params["beta1"], params["w1_oihw"])
    out = _bnconv_ref(h, params["gamma2"], params["beta2"], params["w2_oihw"])
    return x_nchw + out


# --------------------------------- main ------------------------------------ #

if __name__ == "__main__":
    N, C, H, W = 2, 4, 16, 16          # nfilters = 4, kernel_size = 3
    key = jax.random.PRNGKey(0)
    kx, kw1, kw2, kg1, kb1, kg2, kb2 = jax.random.split(key, 7)

    x = jax.random.normal(kx, (N, C, H, W), dtype=jnp.float32)
    w1_oihw = 0.2 * jax.random.normal(kw1, (C, C, 3, 3), dtype=jnp.float32)
    w2_oihw = 0.2 * jax.random.normal(kw2, (C, C, 3, 3), dtype=jnp.float32)
    params = {
        "w1_oihw": w1_oihw,
        "w2_oihw": w2_oihw,
        "gamma1": 1.0 + 0.1 * jax.random.normal(kg1, (C,), dtype=jnp.float32),
        "beta1": 0.1 * jax.random.normal(kb1, (C,), dtype=jnp.float32),
        "gamma2": 1.0 + 0.1 * jax.random.normal(kg2, (C,), dtype=jnp.float32),
        "beta2": 0.1 * jax.random.normal(kb2, (C,), dtype=jnp.float32),
    }

    prep = prepare_params(params, N, H, W)     # one-time packing, outside jit

    out = jax.block_until_ready(jax.jit(resnet_block_pallas)(x, prep))
    ref = jax.block_until_ready(resnet_block_ref(x, params))

    assert out.shape == (N, C, H, W) and out.dtype == jnp.float32
    # Kernel matmuls run in bf16 on the MXU (preferred_element_type=f32);
    # reference uses HIGHEST precision, so tolerance is loosened accordingly.
    max_err = jnp.max(jnp.abs(out - ref))
    assert jnp.allclose(out, ref, rtol=2e-2, atol=2e-2), \
        f"max abs err {max_err}"

    print("KERNEL_OK")
</pallas_src>

<mosaic_0001>
module attributes {stable_mosaic.version = 11 : i64} {
  func.func @_resnet_block_kernel(%arg0: i32, %arg1: memref<2x4x256xf32, #tpu.memory_space<vmem>>, %arg2: memref<18x4x4xf32, #tpu.memory_space<vmem>>, %arg3: memref<4x4xf32, #tpu.memory_space<vmem>>, %arg4: memref<9x512xf32, #tpu.memory_space<vmem>>, %arg5: memref<2x4x256xf32, #tpu.memory_space<vmem>>) attributes {dimension_semantics = [#tpu.dimension_semantics<arbitrary>], iteration_bounds = array<i64: 1>, scalar_prefetch = 0 : i64, scratch_operands = 0 : i64, tpu.core_type = #tpu.core_type<tc>, window_params = [{pipeline_mode = #tpu.pipeline_mode<synchronous>, transform_indices = @transform_0, window_bounds = array<i64: 2, 4, 256>}, {pipeline_mode = #tpu.pipeline_mode<synchronous>, transform_indices = @transform_1, window_bounds = array<i64: 18, 4, 4>}, {pipeline_mode = #tpu.pipeline_mode<synchronous>, transform_indices = @transform_2, window_bounds = array<i64: 4, 4>}, {pipeline_mode = #tpu.pipeline_mode<synchronous>, transform_indices = @transform_3, window_bounds = array<i64: 9, 512>}, {pipeline_mode = #tpu.pipeline_mode<synchronous>, transform_indices = @transform_4, window_bounds = array<i64: 2, 4, 256>}]} {
    %c0 = arith.constant 0 : index
    %c0_0 = arith.constant 0 : index
    %c0_1 = arith.constant 0 : index
    %0 = vector.load %arg1[%c0, %c0_0, %c0_1] : memref<2x4x256xf32, #tpu.memory_space<vmem>>, vector<1x4x256xf32>
    %1 = vector.shape_cast %0 : vector<1x4x256xf32> to vector<4x256xf32>
    %c1 = arith.constant 1 : index
    %c0_2 = arith.constant 0 : index
    %c0_3 = arith.constant 0 : index
    %2 = vector.load %arg1[%c1, %c0_2, %c0_3] : memref<2x4x256xf32, #tpu.memory_space<vmem>>, vector<1x4x256xf32>
    %3 = vector.shape_cast %2 : vector<1x4x256xf32> to vector<4x256xf32>
    %4 = tpu.concatenate %1, %3 in 1 : vector<4x256xf32>, vector<4x256xf32> -> vector<4x512xf32>
    %c0_4 = arith.constant 0 : index
    %c0_5 = arith.constant 0 : index
    %5 = vector.load %arg3[%c0_4, %c0_5] : memref<4x4xf32, #tpu.memory_space<vmem>>, vector<4x4xf32>
    %c0_6 = arith.constant 0 : index
    %c0_7 = arith.constant 0 : index
    %6 = vector.load %arg4[%c0_6, %c0_7] : memref<9x512xf32, #tpu.memory_space<vmem>>, vector<9x512xf32>
    %cst = arith.constant dense<0.000000e+00> : vector<4xf32>
    %7 = vector.multi_reduction <add>, %4, %cst [1] : vector<4x512xf32> to vector<4xf32>
    %8 = vector.shape_cast %7 : vector<4xf32> to vector<4x1xf32>
    %cst_8 = arith.constant 0.001953125 : f32
    %9 = vector.broadcast %cst_8 : f32 to vector<4x1xf32>
    %10 = arith.mulf %8, %9 : vector<4x1xf32>
    %11 = vector.broadcast %10 : vector<4x1xf32> to vector<4x512xf32>
    %12 = arith.subf %4, %11 : vector<4x512xf32>
    %13 = arith.mulf %12, %12 : vector<4x512xf32>
    %cst_9 = arith.constant dense<0.000000e+00> : vector<4xf32>
    %14 = vector.multi_reduction <add>, %13, %cst_9 [1] : vector<4x512xf32> to vector<4xf32>
    %15 = vector.shape_cast %14 : vector<4xf32> to vector<4x1xf32>
    %cst_10 = arith.constant 0.001953125 : f32
    %16 = vector.broadcast %cst_10 : f32 to vector<4x1xf32>
    %17 = arith.mulf %15, %16 : vector<4x1xf32>
    %18 = vector.extract_strided_slice %5 {offsets = [0, 0], sizes = [4, 1], strides = [1, 1]} : vector<4x4xf32> to vector<4x1xf32>
    %19 = vector.extract_strided_slice %5 {offsets = [0, 1], sizes = [4, 1], strides = [1, 1]} : vector<4x4xf32> to vector<4x1xf32>
    %cst_11 = arith.constant 9.99999974E-6 : f32
    %20 = vector.broadcast %cst_11 : f32 to vector<4x1xf32>
    %21 = arith.addf %17, %20 : vector<4x1xf32>
    %22 = math.rsqrt %21 : vector<4x1xf32>
    %23 = arith.mulf %18, %22 : vector<4x1xf32>
    %24 = vector.broadcast %23 : vector<4x1xf32> to vector<4x512xf32>
    %25 = arith.mulf %12, %24 : vector<4x512xf32>
    %26 = vector.broadcast %19 : vector<4x1xf32> to vector<4x512xf32>
    %27 = arith.addf %25, %26 : vector<4x512xf32>
    %cst_12 = arith.constant 0.000000e+00 : f32
    %28 = vector.broadcast %cst_12 : f32 to vector<4x512xf32>
    %29 = arith.maximumf %27, %28 : vector<4x512xf32>
    %cst_13 = arith.constant 0.000000e+00 : f32
    %30 = vector.broadcast %cst_13 : f32 to vector<4x512xf32>
    %c17_i32 = arith.constant 17 : i32
    %31 = tpu.dynamic_rotate %29 by %c17_i32 dim 1 : vector<4x512xf32>, i32 -> vector<4x512xf32>
    %32 = vector.extract_strided_slice %6 {offsets = [0, 0], sizes = [1, 512], strides = [1, 1]} : vector<9x512xf32> to vector<1x512xf32>
    %33 = vector.broadcast %32 : vector<1x512xf32> to vector<4x512xf32>
    %34 = arith.mulf %31, %33 : vector<4x512xf32>
    %35 = arith.truncf %34 : vector<4x512xf32> to vector<4x512xbf16>
    %c0_14 = arith.constant 0 : index
    %c0_15 = arith.constant 0 : index
    %c0_16 = arith.constant 0 : index
    %36 = vector.load %arg2[%c0_14, %c0_15, %c0_16] : memref<18x4x4xf32, #tpu.memory_space<vmem>>, vector<1x4x4xf32>
    %37 = vector.shape_cast %36 : vector<1x4x4xf32> to vector<4x4xf32>
    %38 = arith.truncf %37 : vector<4x4xf32> to vector<4x4xbf16>
    %cst_17 = arith.constant dense<0.000000e+00> : vector<4x512xf32>
    %39 = tpu.matmul %38, %35, %cst_17 {dimension_numbers = #tpu.dot_dimension_numbers<[1], [0], [0], [1], [0, 0, 1, 1], [], []>} : vector<4x4xbf16>, vector<4x512xbf16>, vector<4x512xf32> -> vector<4x512xf32>
    %40 = arith.addf %30, %39 : vector<4x512xf32>
    %c16_i32 = arith.constant 16 : i32
    %41 = tpu.dynamic_rotate %29 by %c16_i32 dim 1 : vector<4x512xf32>, i32 -> vector<4x512xf32>
    %42 = vector.extract_strided_slice %6 {offsets = [1, 0], sizes = [1, 512], strides = [1, 1]} : vector<9x512xf32> to vector<1x512xf32>
    %43 = vector.broadcast %42 : vector<1x512xf32> to vector<4x512xf32>
    %44 = arith.mulf %41, %43 : vector<4x512xf32>
    %45 = arith.truncf %44 : vector<4x512xf32> to vector<4x512xbf16>
    %c1_18 = arith.constant 1 : index
    %c0_19 = arith.constant 0 : index
    %c0_20 = arith.constant 0 : index
    %46 = vector.load %arg2[%c1_18, %c0_19, %c0_20] : memref<18x4x4xf32, #tpu.memory_space<vmem>>, vector<1x4x4xf32>
    %47 = vector.shape_cast %46 : vector<1x4x4xf32> to vector<4x4xf32>
    %48 = arith.truncf %47 : vector<4x4xf32> to vector<4x4xbf16>
    %cst_21 = arith.constant dense<0.000000e+00> : vector<4x512xf32>
    %49 = tpu.matmul %48, %45, %cst_21 {dimension_numbers = #tpu.dot_dimension_numbers<[1], [0], [0], [1], [0, 0, 1, 1], [], []>} : vector<4x4xbf16>, vector<4x512xbf16>, vector<4x512xf32> -> vector<4x512xf32>
    %50 = arith.addf %40, %49 : vector<4x512xf32>
    %c15_i32 = arith.constant 15 : i32
    %51 = tpu.dynamic_rotate %29 by %c15_i32 dim 1 : vector<4x512xf32>, i32 -> vector<4x512xf32>
    %52 = vector.extract_strided_slice %6 {offsets = [2, 0], sizes = [1, 512], strides = [1, 1]} : vector<9x512xf32> to vector<1x512xf32>
    %53 = vector.broadcast %52 : vector<1x512xf32> to vector<4x512xf32>
    %54 = arith.mulf %51, %53 : vector<4x512xf32>
    %55 = arith.truncf %54 : vector<4x512xf32> to vector<4x512xbf16>
    %c2 = arith.constant 2 : index
    %c0_22 = arith.constant 0 : index
    %c0_23 = arith.constant 0 : index
    %56 = vector.load %arg2[%c2, %c0_22, %c0_23] : memref<18x4x4xf32, #tpu.memory_space<vmem>>, vector<1x4x4xf32>
    %57 = vector.shape_cast %56 : vector<1x4x4xf32> to vector<4x4xf32>
    %58 = arith.truncf %57 : vector<4x4xf32> to vector<4x4xbf16>
    %cst_24 = arith.constant dense<0.000000e+00> : vector<4x512xf32>
    %59 = tpu.matmul %58, %55, %cst_24 {dimension_numbers = #tpu.dot_dimension_numbers<[1], [0], [0], [1], [0, 0, 1, 1], [], []>} : vector<4x4xbf16>, vector<4x512xbf16>, vector<4x512xf32> -> vector<4x512xf32>
    %60 = arith.addf %50, %59 : vector<4x512xf32>
    %c1_i32 = arith.constant 1 : i32
    %61 = tpu.dynamic_rotate %29 by %c1_i32 dim 1 : vector<4x512xf32>, i32 -> vector<4x512xf32>
    %62 = vector.extract_strided_slice %6 {offsets = [3, 0], sizes = [1, 512], strides = [1, 1]} : vector<9x512xf32> to vector<1x512xf32>
    %63 = vector.broadcast %62 : vector<1x512xf32> to vector<4x512xf32>
    %64 = arith.mulf %61, %63 : vector<4x512xf32>
    %65 = arith.truncf %64 : vector<4x512xf32> to vector<4x512xbf16>
    %c3 = arith.constant 3 : index
    %c0_25 = arith.constant 0 : index
    %c0_26 = arith.constant 0 : index
    %66 = vector.load %arg2[%c3, %c0_25, %c0_26] : memref<18x4x4xf32, #tpu.memory_space<vmem>>, vector<1x4x4xf32>
    %67 = vector.shape_cast %66 : vector<1x4x4xf32> to vector<4x4xf32>
    %68 = arith.truncf %67 : vector<4x4xf32> to vector<4x4xbf16>
    %cst_27 = arith.constant dense<0.000000e+00> : vector<4x512xf32>
    %69 = tpu.matmul %68, %65, %cst_27 {dimension_numbers = #tpu.dot_dimension_numbers<[1], [0], [0], [1], [0, 0, 1, 1], [], []>} : vector<4x4xbf16>, vector<4x512xbf16>, vector<4x512xf32> -> vector<4x512xf32>
    %70 = arith.addf %60, %69 : vector<4x512xf32>
    %71 = vector.extract_strided_slice %6 {offsets = [4, 0], sizes = [1, 512], strides = [1, 1]} : vector<9x512xf32> to vector<1x512xf32>
    %72 = vector.broadcast %71 : vector<1x512xf32> to vector<4x512xf32>
    %73 = arith.mulf %29, %72 : vector<4x512xf32>
    %74 = arith.truncf %73 : vector<4x512xf32> to vector<4x512xbf16>
    %c4 = arith.constant 4 : index
    %c0_28 = arith.constant 0 : index
    %c0_29 = arith.constant 0 : index
    %75 = vector.load %arg2[%c4, %c0_28, %c0_29] : memref<18x4x4xf32, #tpu.memory_space<vmem>>, vector<1x4x4xf32>
    %76 = vector.shape_cast %75 : vector<1x4x4xf32> to vector<4x4xf32>
    %77 = arith.truncf %76 : vector<4x4xf32> to vector<4x4xbf16>
    %cst_30 = arith.constant dense<0.000000e+00> : vector<4x512xf32>
    %78 = tpu.matmul %77, %74, %cst_30 {dimension_numbers = #tpu.dot_dimension_numbers<[1], [0], [0], [1], [0, 0, 1, 1], [], []>} : vector<4x4xbf16>, vector<4x512xbf16>, vector<4x512xf32> -> vector<4x512xf32>
    %79 = arith.addf %70, %78 : vector<4x512xf32>
    %c511_i32 = arith.constant 511 : i32
    %80 = tpu.dynamic_rotate %29 by %c511_i32 dim 1 : vector<4x512xf32>, i32 -> vector<4x512xf32>
    %81 = vector.extract_strided_slice %6 {offsets = [5, 0], sizes = [1, 512], strides = [1, 1]} : vector<9x512xf32> to vector<1x512xf32>
    %82 = vector.broadcast %81 : vector<1x512xf32> to vector<4x512xf32>
    %83 = arith.mulf %80, %82 : vector<4x512xf32>
    %84 = arith.truncf %83 : vector<4x512xf32> to vector<4x512xbf16>
    %c5 = arith.constant 5 : index
    %c0_31 = arith.constant 0 : index
    %c0_32 = arith.constant 0 : index
    %85 = vector.load %arg2[%c5, %c0_31, %c0_32] : memref<18x4x4xf32, #tpu.memory_space<vmem>>, vector<1x4x4xf32>
    %86 = vector.shape_cast %85 : vector<1x4x4xf32> to vector<4x4xf32>
    %87 = arith.truncf %86 : vector<4x4xf32> to vector<4x4xbf16>
    %cst_33 = arith.constant dense<0.000000e+00> : vector<4x512xf32>
    %88 = tpu.matmul %87, %84, %cst_33 {dimension_numbers = #tpu.dot_dimension_numbers<[1], [0], [0], [1], [0, 0, 1, 1], [], []>} : vector<4x4xbf16>, vector<4x512xbf16>, vector<4x512xf32> -> vector<4x512xf32>
    %89 = arith.addf %79, %88 : vector<4x512xf32>
    %c497_i32 = arith.constant 497 : i32
    %90 = tpu.dynamic_rotate %29 by %c497_i32 dim 1 : vector<4x512xf32>, i32 -> vector<4x512xf32>
    %91 = vector.extract_strided_slice %6 {offsets = [6, 0], sizes = [1, 512], strides = [1, 1]} : vector<9x512xf32> to vector<1x512xf32>
    %92 = vector.broadcast %91 : vector<1x512xf32> to vector<4x512xf32>
    %93 = arith.mulf %90, %92 : vector<4x512xf32>
    %94 = arith.truncf %93 : vector<4x512xf32> to vector<4x512xbf16>
    %c6 = arith.constant 6 : index
    %c0_34 = arith.constant 0 : index
    %c0_35 = arith.constant 0 : index
    %95 = vector.load %arg2[%c6, %c0_34, %c0_35] : memref<18x4x4xf32, #tpu.memory_space<vmem>>, vector<1x4x4xf32>
    %96 = vector.shape_cast %95 : vector<1x4x4xf32> to vector<4x4xf32>
    %97 = arith.truncf %96 : vector<4x4xf32> to vector<4x4xbf16>
    %cst_36 = arith.constant dense<0.000000e+00> : vector<4x512xf32>
    %98 = tpu.matmul %97, %94, %cst_36 {dimension_numbers = #tpu.dot_dimension_numbers<[1], [0], [0], [1], [0, 0, 1, 1], [], []>} : vector<4x4xbf16>, vector<4x512xbf16>, vector<4x512xf32> -> vector<4x512xf32>
    %99 = arith.addf %89, %98 : vector<4x512xf32>
    %c496_i32 = arith.constant 496 : i32
    %100 = tpu.dynamic_rotate %29 by %c496_i32 dim 1 : vector<4x512xf32>, i32 -> vector<4x512xf32>
    %101 = vector.extract_strided_slice %6 {offsets = [7, 0], sizes = [1, 512], strides = [1, 1]} : vector<9x512xf32> to vector<1x512xf32>
    %102 = vector.broadcast %101 : vector<1x512xf32> to vector<4x512xf32>
    %103 = arith.mulf %100, %102 : vector<4x512xf32>
    %104 = arith.truncf %103 : vector<4x512xf32> to vector<4x512xbf16>
    %c7 = arith.constant 7 : index
    %c0_37 = arith.constant 0 : index
    %c0_38 = arith.constant 0 : index
    %105 = vector.load %arg2[%c7, %c0_37, %c0_38] : memref<18x4x4xf32, #tpu.memory_space<vmem>>, vector<1x4x4xf32>
    %106 = vector.shape_cast %105 : vector<1x4x4xf32> to vector<4x4xf32>
    %107 = arith.truncf %106 : vector<4x4xf32> to vector<4x4xbf16>
    %cst_39 = arith.constant dense<0.000000e+00> : vector<4x512xf32>
    %108 = tpu.matmul %107, %104, %cst_39 {dimension_numbers = #tpu.dot_dimension_numbers<[1], [0], [0], [1], [0, 0, 1, 1], [], []>} : vector<4x4xbf16>, vector<4x512xbf16>, vector<4x512xf32> -> vector<4x512xf32>
    %109 = arith.addf %99, %108 : vector<4x512xf32>
    %c495_i32 = arith.constant 495 : i32
    %110 = tpu.dynamic_rotate %29 by %c495_i32 dim 1 : vector<4x512xf32>, i32 -> vector<4x512xf32>
    %111 = vector.extract_strided_slice %6 {offsets = [8, 0], sizes = [1, 512], strides = [1, 1]} : vector<9x512xf32> to vector<1x512xf32>
    %112 = vector.broadcast %111 : vector<1x512xf32> to vector<4x512xf32>
    %113 = arith.mulf %110, %112 : vector<4x512xf32>
    %114 = arith.truncf %113 : vector<4x512xf32> to vector<4x512xbf16>
    %c8 = arith.constant 8 : index
    %c0_40 = arith.constant 0 : index
    %c0_41 = arith.constant 0 : index
    %115 = vector.load %arg2[%c8, %c0_40, %c0_41] : memref<18x4x4xf32, #tpu.memory_space<vmem>>, vector<1x4x4xf32>
    %116 = vector.shape_cast %115 : vector<1x4x4xf32> to vector<4x4xf32>
    %117 = arith.truncf %116 : vector<4x4xf32> to vector<4x4xbf16>
    %cst_42 = arith.constant dense<0.000000e+00> : vector<4x512xf32>
    %118 = tpu.matmul %117, %114, %cst_42 {dimension_numbers = #tpu.dot_dimension_numbers<[1], [0], [0], [1], [0, 0, 1, 1], [], []>} : vector<4x4xbf16>, vector<4x512xbf16>, vector<4x512xf32> -> vector<4x512xf32>
    %119 = arith.addf %109, %118 : vector<4x512xf32>
    %cst_43 = arith.constant dense<0.000000e+00> : vector<4xf32>
    %120 = vector.multi_reduction <add>, %119, %cst_43 [1] : vector<4x512xf32> to vector<4xf32>
    %121 = vector.shape_cast %120 : vector<4xf32> to vector<4x1xf32>
    %cst_44 = arith.constant 0.001953125 : f32
    %122 = vector.broadcast %cst_44 : f32 to vector<4x1xf32>
    %123 = arith.mulf %121, %122 : vector<4x1xf32>
    %124 = vector.broadcast %123 : vector<4x1xf32> to vector<4x512xf32>
    %125 = arith.subf %119, %124 : vector<4x512xf32>
    %126 = arith.mulf %125, %125 : vector<4x512xf32>
    %cst_45 = arith.constant dense<0.000000e+00> : vector<4xf32>
    %127 = vector.multi_reduction <add>, %126, %cst_45 [1] : vector<4x512xf32> to vector<4xf32>
    %128 = vector.shape_cast %127 : vector<4xf32> to vector<4x1xf32>
    %cst_46 = arith.constant 0.001953125 : f32
    %129 = vector.broadcast %cst_46 : f32 to vector<4x1xf32>
    %130 = arith.mulf %128, %129 : vector<4x1xf32>
    %131 = vector.extract_strided_slice %5 {offsets = [0, 2], sizes = [4, 1], strides = [1, 1]} : vector<4x4xf32> to vector<4x1xf32>
    %132 = vector.extract_strided_slice %5 {offsets = [0, 3], sizes = [4, 1], strides = [1, 1]} : vector<4x4xf32> to vector<4x1xf32>
    %cst_47 = arith.constant 9.99999974E-6 : f32
    %133 = vector.broadcast %cst_47 : f32 to vector<4x1xf32>
    %134 = arith.addf %130, %133 : vector<4x1xf32>
    %135 = math.rsqrt %134 : vector<4x1xf32>
    %136 = arith.mulf %131, %135 : vector<4x1xf32>
    %137 = vector.broadcast %136 : vector<4x1xf32> to vector<4x512xf32>
    %138 = arith.mulf %125, %137 : vector<4x512xf32>
    %139 = vector.broadcast %132 : vector<4x1xf32> to vector<4x512xf32>
    %140 = arith.addf %138, %139 : vector<4x512xf32>
    %cst_48 = arith.constant 0.000000e+00 : f32
    %141 = vector.broadcast %cst_48 : f32 to vector<4x512xf32>
    %142 = arith.maximumf %140, %141 : vector<4x512xf32>
    %cst_49 = arith.constant 0.000000e+00 : f32
    %143 = vector.broadcast %cst_49 : f32 to vector<4x512xf32>
    %c17_i32_50 = arith.constant 17 : i32
    %144 = tpu.dynamic_rotate %142 by %c17_i32_50 dim 1 : vector<4x512xf32>, i32 -> vector<4x512xf32>
    %145 = vector.extract_strided_slice %6 {offsets = [0, 0], sizes = [1, 512], strides = [1, 1]} : vector<9x512xf32> to vector<1x512xf32>
    %146 = vector.broadcast %145 : vector<1x512xf32> to vector<4x512xf32>
    %147 = arith.mulf %144, %146 : vector<4x512xf32>
    %148 = arith.truncf %147 : vector<4x512xf32> to vector<4x512xbf16>
    %c9 = arith.constant 9 : index
    %c0_51 = arith.constant 0 : index
    %c0_52 = arith.constant 0 : index
    %149 = vector.load %arg2[%c9, %c0_51, %c0_52] : memref<18x4x4xf32, #tpu.memory_space<vmem>>, vector<1x4x4xf32>
    %150 = vector.shape_cast %149 : vector<1x4x4xf32> to vector<4x4xf32>
    %151 = arith.truncf %150 : vector<4x4xf32> to vector<4x4xbf16>
    %cst_53 = arith.constant dense<0.000000e+00> : vector<4x512xf32>
    %152 = tpu.matmul %151, %148, %cst_53 {dimension_numbers = #tpu.dot_dimension_numbers<[1], [0], [0], [1], [0, 0, 1, 1], [], []>} : vector<4x4xbf16>, vector<4x512xbf16>, vector<4x512xf32> -> vector<4x512xf32>
    %153 = arith.addf %143, %152 : vector<4x512xf32>
    %c16_i32_54 = arith.constant 16 : i32
    %154 = tpu.dynamic_rotate %142 by %c16_i32_54 dim 1 : vector<4x512xf32>, i32 -> vector<4x512xf32>
    %155 = vector.extract_strided_slice %6 {offsets = [1, 0], sizes = [1, 512], strides = [1, 1]} : vector<9x512xf32> to vector<1x512xf32>
    %156 = vector.broadcast %155 : vector<1x512xf32> to vector<4x512xf32>
    %157 = arith.mulf %154, %156 : vector<4x512xf32>
    %158 = arith.truncf %157 : vector<4x512xf32> to vector<4x512xbf16>
    %c10 = arith.constant 10 : index
    %c0_55 = arith.constant 0 : index
    %c0_56 = arith.constant 0 : index
    %159 = vector.load %arg2[%c10, %c0_55, %c0_56] : memref<18x4x4xf32, #tpu.memory_space<vmem>>, vector<1x4x4xf32>
    %160 = vector.shape_cast %159 : vector<1x4x4xf32> to vector<4x4xf32>
    %161 = arith.truncf %160 : vector<4x4xf32> to vector<4x4xbf16>
    %cst_57 = arith.constant dense<0.000000e+00> : vector<4x512xf32>
    %162 = tpu.matmul %161, %158, %cst_57 {dimension_numbers = #tpu.dot_dimension_numbers<[1], [0], [0], [1], [0, 0, 1, 1], [], []>} : vector<4x4xbf16>, vector<4x512xbf16>, vector<4x512xf32> -> vector<4x512xf32>
    %163 = arith.addf %153, %162 : vector<4x512xf32>
    %c15_i32_58 = arith.constant 15 : i32
    %164 = tpu.dynamic_rotate %142 by %c15_i32_58 dim 1 : vector<4x512xf32>, i32 -> vector<4x512xf32>
    %165 = vector.extract_strided_slice %6 {offsets = [2, 0], sizes = [1, 512], strides = [1, 1]} : vector<9x512xf32> to vector<1x512xf32>
    %166 = vector.broadcast %165 : vector<1x512xf32> to vector<4x512xf32>
    %167 = arith.mulf %164, %166 : vector<4x512xf32>
    %168 = arith.truncf %167 : vector<4x512xf32> to vector<4x512xbf16>
    %c11 = arith.constant 11 : index
    %c0_59 = arith.constant 0 : index
    %c0_60 = arith.constant 0 : index
    %169 = vector.load %arg2[%c11, %c0_59, %c0_60] : memref<18x4x4xf32, #tpu.memory_space<vmem>>, vector<1x4x4xf32>
    %170 = vector.shape_cast %169 : vector<1x4x4xf32> to vector<4x4xf32>
    %171 = arith.truncf %170 : vector<4x4xf32> to vector<4x4xbf16>
    %cst_61 = arith.constant dense<0.000000e+00> : vector<4x512xf32>
    %172 = tpu.matmul %171, %168, %cst_61 {dimension_numbers = #tpu.dot_dimension_numbers<[1], [0], [0], [1], [0, 0, 1, 1], [], []>} : vector<4x4xbf16>, vector<4x512xbf16>, vector<4x512xf32> -> vector<4x512xf32>
    %173 = arith.addf %163, %172 : vector<4x512xf32>
    %c1_i32_62 = arith.constant 1 : i32
    %174 = tpu.dynamic_rotate %142 by %c1_i32_62 dim 1 : vector<4x512xf32>, i32 -> vector<4x512xf32>
    %175 = vector.extract_strided_slice %6 {offsets = [3, 0], sizes = [1, 512], strides = [1, 1]} : vector<9x512xf32> to vector<1x512xf32>
    %176 = vector.broadcast %175 : vector<1x512xf32> to vector<4x512xf32>
    %177 = arith.mulf %174, %176 : vector<4x512xf32>
    %178 = arith.truncf %177 : vector<4x512xf32> to vector<4x512xbf16>
    %c12 = arith.constant 12 : index
    %c0_63 = arith.constant 0 : index
    %c0_64 = arith.constant 0 : index
    %179 = vector.load %arg2[%c12, %c0_63, %c0_64] : memref<18x4x4xf32, #tpu.memory_space<vmem>>, vector<1x4x4xf32>
    %180 = vector.shape_cast %179 : vector<1x4x4xf32> to vector<4x4xf32>
    %181 = arith.truncf %180 : vector<4x4xf32> to vector<4x4xbf16>
    %cst_65 = arith.constant dense<0.000000e+00> : vector<4x512xf32>
    %182 = tpu.matmul %181, %178, %cst_65 {dimension_numbers = #tpu.dot_dimension_numbers<[1], [0], [0], [1], [0, 0, 1, 1], [], []>} : vector<4x4xbf16>, vector<4x512xbf16>, vector<4x512xf32> -> vector<4x512xf32>
    %183 = arith.addf %173, %182 : vector<4x512xf32>
    %184 = vector.extract_strided_slice %6 {offsets = [4, 0], sizes = [1, 512], strides = [1, 1]} : vector<9x512xf32> to vector<1x512xf32>
    %185 = vector.broadcast %184 : vector<1x512xf32> to vector<4x512xf32>
    %186 = arith.mulf %142, %185 : vector<4x512xf32>
    %187 = arith.truncf %186 : vector<4x512xf32> to vector<4x512xbf16>
    %c13 = arith.constant 13 : index
    %c0_66 = arith.constant 0 : index
    %c0_67 = arith.constant 0 : index
    %188 = vector.load %arg2[%c13, %c0_66, %c0_67] : memref<18x4x4xf32, #tpu.memory_space<vmem>>, vector<1x4x4xf32>
    %189 = vector.shape_cast %188 : vector<1x4x4xf32> to vector<4x4xf32>
    %190 = arith.truncf %189 : vector<4x4xf32> to vector<4x4xbf16>
    %cst_68 = arith.constant dense<0.000000e+00> : vector<4x512xf32>
    %191 = tpu.matmul %190, %187, %cst_68 {dimension_numbers = #tpu.dot_dimension_numbers<[1], [0], [0], [1], [0, 0, 1, 1], [], []>} : vector<4x4xbf16>, vector<4x512xbf16>, vector<4x512xf32> -> vector<4x512xf32>
    %192 = arith.addf %183, %191 : vector<4x512xf32>
    %c511_i32_69 = arith.constant 511 : i32
    %193 = tpu.dynamic_rotate %142 by %c511_i32_69 dim 1 : vector<4x512xf32>, i32 -> vector<4x512xf32>
    %194 = vector.extract_strided_slice %6 {offsets = [5, 0], sizes = [1, 512], strides = [1, 1]} : vector<9x512xf32> to vector<1x512xf32>
    %195 = vector.broadcast %194 : vector<1x512xf32> to vector<4x512xf32>
    %196 = arith.mulf %193, %195 : vector<4x512xf32>
    %197 = arith.truncf %196 : vector<4x512xf32> to vector<4x512xbf16>
    %c14 = arith.constant 14 : index
    %c0_70 = arith.constant 0 : index
    %c0_71 = arith.constant 0 : index
    %198 = vector.load %arg2[%c14, %c0_70, %c0_71] : memref<18x4x4xf32, #tpu.memory_space<vmem>>, vector<1x4x4xf32>
    %199 = vector.shape_cast %198 : vector<1x4x4xf32> to vector<4x4xf32>
    %200 = arith.truncf %199 : vector<4x4xf32> to vector<4x4xbf16>
    %cst_72 = arith.constant dense<0.000000e+00> : vector<4x512xf32>
    %201 = tpu.matmul %200, %197, %cst_72 {dimension_numbers = #tpu.dot_dimension_numbers<[1], [0], [0], [1], [0, 0, 1, 1], [], []>} : vector<4x4xbf16>, vector<4x512xbf16>, vector<4x512xf32> -> vector<4x512xf32>
    %202 = arith.addf %192, %201 : vector<4x512xf32>
    %c497_i32_73 = arith.constant 497 : i32
    %203 = tpu.dynamic_rotate %142 by %c497_i32_73 dim 1 : vector<4x512xf32>, i32 -> vector<4x512xf32>
    %204 = vector.extract_strided_slice %6 {offsets = [6, 0], sizes = [1, 512], strides = [1, 1]} : vector<9x512xf32> to vector<1x512xf32>
    %205 = vector.broadcast %204 : vector<1x512xf32> to vector<4x512xf32>
    %206 = arith.mulf %203, %205 : vector<4x512xf32>
    %207 = arith.truncf %206 : vector<4x512xf32> to vector<4x512xbf16>
    %c15 = arith.constant 15 : index
    %c0_74 = arith.constant 0 : index
    %c0_75 = arith.constant 0 : index
    %208 = vector.load %arg2[%c15, %c0_74, %c0_75] : memref<18x4x4xf32, #tpu.memory_space<vmem>>, vector<1x4x4xf32>
    %209 = vector.shape_cast %208 : vector<1x4x4xf32> to vector<4x4xf32>
    %210 = arith.truncf %209 : vector<4x4xf32> to vector<4x4xbf16>
    %cst_76 = arith.constant dense<0.000000e+00> : vector<4x512xf32>
    %211 = tpu.matmul %210, %207, %cst_76 {dimension_numbers = #tpu.dot_dimension_numbers<[1], [0], [0], [1], [0, 0, 1, 1], [], []>} : vector<4x4xbf16>, vector<4x512xbf16>, vector<4x512xf32> -> vector<4x512xf32>
    %212 = arith.addf %202, %211 : vector<4x512xf32>
    %c496_i32_77 = arith.constant 496 : i32
    %213 = tpu.dynamic_rotate %142 by %c496_i32_77 dim 1 : vector<4x512xf32>, i32 -> vector<4x512xf32>
    %214 = vector.extract_strided_slice %6 {offsets = [7, 0], sizes = [1, 512], strides = [1, 1]} : vector<9x512xf32> to vector<1x512xf32>
    %215 = vector.broadcast %214 : vector<1x512xf32> to vector<4x512xf32>
    %216 = arith.mulf %213, %215 : vector<4x512xf32>
    %217 = arith.truncf %216 : vector<4x512xf32> to vector<4x512xbf16>
    %c16 = arith.constant 16 : index
    %c0_78 = arith.constant 0 : index
    %c0_79 = arith.constant 0 : index
    %218 = vector.load %arg2[%c16, %c0_78, %c0_79] : memref<18x4x4xf32, #tpu.memory_space<vmem>>, vector<1x4x4xf32>
    %219 = vector.shape_cast %218 : vector<1x4x4xf32> to vector<4x4xf32>
    %220 = arith.truncf %219 : vector<4x4xf32> to vector<4x4xbf16>
    %cst_80 = arith.constant dense<0.000000e+00> : vector<4x512xf32>
    %221 = tpu.matmul %220, %217, %cst_80 {dimension_numbers = #tpu.dot_dimension_numbers<[1], [0], [0], [1], [0, 0, 1, 1], [], []>} : vector<4x4xbf16>, vector<4x512xbf16>, vector<4x512xf32> -> vector<4x512xf32>
    %222 = arith.addf %212, %221 : vector<4x512xf32>
    %c495_i32_81 = arith.constant 495 : i32
    %223 = tpu.dynamic_rotate %142 by %c495_i32_81 dim 1 : vector<4x512xf32>, i32 -> vector<4x512xf32>
    %224 = vector.extract_strided_slice %6 {offsets = [8, 0], sizes = [1, 512], strides = [1, 1]} : vector<9x512xf32> to vector<1x512xf32>
    %225 = vector.broadcast %224 : vector<1x512xf32> to vector<4x512xf32>
    %226 = arith.mulf %223, %225 : vector<4x512xf32>
    %227 = arith.truncf %226 : vector<4x512xf32> to vector<4x512xbf16>
    %c17 = arith.constant 17 : index
    %c0_82 = arith.constant 0 : index
    %c0_83 = arith.constant 0 : index
    %228 = vector.load %arg2[%c17, %c0_82, %c0_83] : memref<18x4x4xf32, #tpu.memory_space<vmem>>, vector<1x4x4xf32>
    %229 = vector.shape_cast %228 : vector<1x4x4xf32> to vector<4x4xf32>
    %230 = arith.truncf %229 : vector<4x4xf32> to vector<4x4xbf16>
    %cst_84 = arith.constant dense<0.000000e+00> : vector<4x512xf32>
    %231 = tpu.matmul %230, %227, %cst_84 {dimension_numbers = #tpu.dot_dimension_numbers<[1], [0], [0], [1], [0, 0, 1, 1], [], []>} : vector<4x4xbf16>, vector<4x512xbf16>, vector<4x512xf32> -> vector<4x512xf32>
    %232 = arith.addf %222, %231 : vector<4x512xf32>
    %233 = arith.addf %4, %232 : vector<4x512xf32>
    %234 = vector.extract_strided_slice %233 {offsets = [0, 0], sizes = [4, 256], strides = [1, 1]} : vector<4x512xf32> to vector<4x256xf32>
    %c0_85 = arith.constant 0 : index
    %c0_86 = arith.constant 0 : index
    %c0_87 = arith.constant 0 : index
    %235 = vector.load %arg5[%c0_85, %c0_86, %c0_87] : memref<2x4x256xf32, #tpu.memory_space<vmem>>, vector<1x4x256xf32>
    %236 = vector.shape_cast %235 : vector<1x4x256xf32> to vector<4x256xf32>
    %237 = vector.shape_cast %234 : vector<4x256xf32> to vector<1x4x256xf32>
    tpu.vector_store %arg5[%c0_85, %c0_86, %c0_87], %237 {strides = array<i32>} : memref<2x4x256xf32, #tpu.memory_space<vmem>>, vector<1x4x256xf32>,
    %238 = vector.extract_strided_slice %233 {offsets = [0, 256], sizes = [4, 256], strides = [1, 1]} : vector<4x512xf32> to vector<4x256xf32>
    %c1_88 = arith.constant 1 : index
    %c0_89 = arith.constant 0 : index
    %c0_90 = arith.constant 0 : index
    %239 = vector.load %arg5[%c1_88, %c0_89, %c0_90] : memref<2x4x256xf32, #tpu.memory_space<vmem>>, vector<1x4x256xf32>
    %240 = vector.shape_cast %239 : vector<1x4x256xf32> to vector<4x256xf32>
    %241 = vector.shape_cast %238 : vector<4x256xf32> to vector<1x4x256xf32>
    tpu.vector_store %arg5[%c1_88, %c0_89, %c0_90], %241 {strides = array<i32>} : memref<2x4x256xf32, #tpu.memory_space<vmem>>, vector<1x4x256xf32>,
    return
  }
  func.func @transform_0(%arg0: i32) -> (i32, i32, i32) {
    %c0_i32 = arith.constant 0 : i32
    %c0_i32_0 = arith.constant 0 : i32
    %c0_i32_1 = arith.constant 0 : i32
    %c0_i32_2 = arith.constant 0 : i32
    return %c0_i32, %c0_i32_0, %c0_i32_1 : i32, i32, i32
  }
  func.func @transform_1(%arg0: i32) -> (i32, i32, i32) {
    %c0_i32 = arith.constant 0 : i32
    %c0_i32_0 = arith.constant 0 : i32
    %c0_i32_1 = arith.constant 0 : i32
    %c0_i32_2 = arith.constant 0 : i32
    return %c0_i32, %c0_i32_0, %c0_i32_1 : i32, i32, i32
  }
  func.func @transform_2(%arg0: i32) -> (i32, i32) {
    %c0_i32 = arith.constant 0 : i32
    %c0_i32_0 = arith.constant 0 : i32
    %c0_i32_1 = arith.constant 0 : i32
    return %c0_i32, %c0_i32_0 : i32, i32
  }
  func.func @transform_3(%arg0: i32) -> (i32, i32) {
    %c0_i32 = arith.constant 0 : i32
    %c0_i32_0 = arith.constant 0 : i32
    %c0_i32_1 = arith.constant 0 : i32
    return %c0_i32, %c0_i32_0 : i32, i32
  }
  func.func @transform_4(%arg0: i32) -> (i32, i32, i32) {
    %c0_i32 = arith.constant 0 : i32
    %c0_i32_0 = arith.constant 0 : i32
    %c0_i32_1 = arith.constant 0 : i32
    %c0_i32_2 = arith.constant 0 : i32
    return %c0_i32, %c0_i32_0, %c0_i32_1 : i32, i32, i32
  }
}

</mosaic_0001>

<llo_original>
// kernel: resnet_block_pallas.1
$region0: #{resnet_block_pallas.1}
  #allocation0 [shape = 'u32[]', space=smem, size = 0x4, offset = 0x4, fixed_abs, tag = 'smem constant byte address 0x4 - core index']
  #allocation1 [shape = 'u32[72,128]{1,0:T(1,128)}', space=vmem, size = 0x9000, scoped, tag = 'internal scratch']
  %s0 = inlined_call_operand.vmem [shape: f32[2,4,256], index: 0, kind: input, shape index: {}]
  %s1 = inlined_call_operand.vmem [shape: f32[18,4,4], index: 1, kind: input, shape index: {}]
  %s2 = inlined_call_operand.vmem [shape: f32[4,4], index: 2, kind: input, shape index: {}]
  %s3 = inlined_call_operand.vmem [shape: f32[9,512], index: 3, kind: input, shape index: {}]
  %s4 = inlined_call_operand.vmem [shape: f32[2,4,256], index: 4, kind: output, shape index: {}]
  %s5 = sld [smem:[#allocation0]]
  $region26: #{resnet_block_pallas.1} parent=0
    _
  %s7 = ssub.s32 1, %s5
  %s8 = scalar_select 0, %s7, %s5
  // Predicated region
  $region2: #{resnet_block_pallas.1} parent=0 // pred_check
    _
  $region3: #{resnet_block_pallas.1} parent=0 // pred_check_branch
    %10 = sbr.rel (0) target = $region5
  $region4: #{resnet_block_pallas.1} parent=0 // pred_region
    _
  $region5: #{resnet_block_pallas.1} parent=0 // pred_fallthru
    _
  // Predicated region
  $region6: #{resnet_block_pallas.1} parent=0 // pred_check
    _
  $region7: #{resnet_block_pallas.1} parent=0 // pred_check_branch
    %12 = sbr.rel (0) target = $region9
  $region8: #{resnet_block_pallas.1} parent=0 // pred_region
    _
  $region9: #{resnet_block_pallas.1} parent=0 // pred_fallthru
    _
  // Predicated region
  $region10: #{resnet_block_pallas.1} parent=0 // pred_check
    _
  $region11: #{resnet_block_pallas.1} parent=0 // pred_check_branch
    %14 = sbr.rel (0) target = $region13
  $region12: #{resnet_block_pallas.1} parent=0 // pred_region
    _
  $region13: #{resnet_block_pallas.1} parent=0 // pred_fallthru
    _
  // Predicated region
  $region14: #{resnet_block_pallas.1} parent=0 // pred_check
    _
  $region15: #{resnet_block_pallas.1} parent=0 // pred_check_branch
    %16 = sbr.rel (0) target = $region17
  $region16: #{resnet_block_pallas.1} parent=0 // pred_region
    _
  $region17: #{resnet_block_pallas.1} parent=0 // pred_fallthru
    _
  %v18 = vld [vmem:[%s0] sm:$0xff]
  %s19 = scalar_lea.vmem %s0, 8
  %v20 = vld [vmem:[%s19] sm:$0xff]
  %22 = vst [vmem:[#allocation1] ss:$2 sm:$0xff] %v18
  %v23 = vld.sshfl [vmem:[#allocation1] sm:$0xff pattern:$0x75316420]
  %v24 = vld.sshfl [vmem:[#allocation1 + $0x8] sm:$0xff pattern:$0x75316420]
  %28 = vst [vmem:[#allocation1] ss:$2 sm:$0xff] %v20
  %v29 = vld.sshfl [vmem:[#allocation1] sm:$0xff pattern:$0x75316420]
  %v30 = vld.sshfl [vmem:[#allocation1 + $0x8] sm:$0xff pattern:$0x75316420]
  %v33 = vld [vmem:[%s2] sm:$0xf]
  %v34 = vld [vmem:[%s3] sm:$0xff]
  %v35 = vld [vmem:[%s3 + $0x8] sm:$0xff]
  %v36 = vld [vmem:[%s3 + $0x10] sm:$0xff]
  %v37 = vld [vmem:[%s3 + $0x18] sm:$0xff]
  %v38 = vld [vmem:[%s3 + $0x20] sm:$0x1]
  %v39 = vld [vmem:[%s3 + $0x28] sm:$0x1]
  %v40 = vld [vmem:[%s3 + $0x30] sm:$0x1]
  %v41 = vld [vmem:[%s3 + $0x38] sm:$0x1]
  %vm42 = vcmask 1043456
  %v43 = vsel %vm42, %v23, 0.0
  %v44 = vsel %vm42, %v24, 0.0
  %v45 = vadd.f32 %v43, %v44
  %v46 = vsel %vm42, %v29, 0.0
  %v47 = vadd.f32 %v45, %v46
  %v48 = vsel %vm42, %v30, 0.0
  %v49 = vadd.f32 %v47, %v48
  %50 = vadd.xlane.f32.xlu0 %v49
  %v51 = vpop.xlane.xlu0 %50
  %v52 = vmul.f32 %v51, 0.001953125
  %v53 = vsub.f32 %v23, %v52
  %v54 = vsub.f32 %v24, %v52
  %v55 = vsub.f32 %v29, %v52
  %v56 = vsub.f32 %v30, %v52
  %v57 = vmul.f32 %v53, %v53
  %v58 = vmul.f32 %v54, %v54
  %v59 = vmul.f32 %v55, %v55
  %v60 = vmul.f32 %v56, %v56
  %v61 = vsel %vm42, %v57, 0.0
  %v62 = vsel %vm42, %v58, 0.0
  %v63 = vadd.f32 %v61, %v62
  %v64 = vsel %vm42, %v59, 0.0
  %v65 = vadd.f32 %v63, %v64
  %v66 = vsel %vm42, %v60, 0.0
  %v67 = vadd.f32 %v65, %v66
  %68 = vadd.xlane.f32.xlu0 %v67
  %v69 = vpop.xlane.xlu0 %68
  %v70 = vmul.f32 %v69, 0.001953125
  %v71 = vadd.f32 %v70, 1e-05
  %v72 = vrsqrt.pop %v71
  %v73 = vmul.f32 %v72, %v71
  %v74 = vmul.f32 %v73, %v72
  %v75 = vmul.f32 0.5, %v74
  %v76 = vsub.f32 1.5, %v75
  %v77 = vmul.f32 %v72, %v76
  %vm78 = vweird.f32 %v71
  %vm79 = vweird.f32 %v72
  %vm80 = vmor %vm78, %vm79
  %v81 = vsel %vm80, %v72, %v77
  %v82 = vmul.f32 %v33, %v81
  %84 = vset.pattern.permute.xlu0 0
  %85 = vperm.xlu0 %84, %v82
  %v86 = vpop.permute.xlu0 %85
  %v88 = vmul.f32 %v53, %v86
  %v89 = vmul.f32 %v54, %v86
  %v90 = vmul.f32 %v55, %v86
  %v91 = vmul.f32 %v56, %v86
  %93 = vset.pattern.permute.xlu0 1
  %94 = vperm.xlu0 %93, %v33
  %v95 = vpop.permute.xlu0 %94
  %v97 = vadd.f32 %v88, %v95
  %v98 = vadd.f32 %v89, %v95
  %v99 = vadd.f32 %v90, %v95
  %v100 = vadd.f32 %v91, %v95
  %v101 = vmax.f32 %v97, 0.0
  %v102 = vmax.f32 %v98, 0.0
  %v103 = vmax.f32 %v99, 0.0
  %v104 = vmax.f32 %v100, 0.0
  %105 = vrot.lane.b32.xlu0 %v101, 17
  %v106 = vpop.permute.xlu0 %105
  %107 = vrot.lane.b32.xlu0 %v102, 17
  %v108 = vpop.permute.xlu0 %107
  %109 = vrot.lane.b32.xlu0 %v103, 17
  %v110 = vpop.permute.xlu0 %109
  %111 = vrot.lane.b32.xlu0 %v104, 17
  %v112 = vpop.permute.xlu0 %111
  %v113 = vlaneseq
  %v114 = vand.u32 %v113, 127
  %vm115 = vcmp.lt.s32.totalorder %v114, 17
  %v116 = vsel %vm115, %v110, %v112
  %v117 = vsel %vm115, %v108, %v110
  %v118 = vsel %vm115, %v106, %v108
  %v119 = vsel %vm115, %v112, %v106
  %v120 = vperm.slane %v34, 0
  %v121 = vperm.slane %v35, 0
  %v122 = vperm.slane %v36, 0
  %v123 = vperm.slane %v37, 0
  %v124 = vmul.f32 %v119, %v120
  %v125 = vmul.f32 %v118, %v121
  %v126 = vmul.f32 %v117, %v122
  %v127 = vmul.f32 %v116, %v123
  %v128 = vpack.c.bf16 %v124, %v124
  %v129 = vpack.c.bf16 %v125, %v125
  %v130 = vpack.c.bf16 %v126, %v126
  %v131 = vpack.c.bf16 %v127, %v127
  %v132 = vld [vmem:[%s1] sm:$0xf]
  %v133 = vpack.c.bf16 %v132, %v132
  %134 = vrot.lane.b32.xlu0 %v101, 16
  %v135 = vpop.permute.xlu0 %134
  %136 = vrot.lane.b32.xlu0 %v102, 16
  %v137 = vpop.permute.xlu0 %136
  %138 = vrot.lane.b32.xlu0 %v103, 16
  %v139 = vpop.permute.xlu0 %138
  %140 = vrot.lane.b32.xlu0 %v104, 16
  %v141 = vpop.permute.xlu0 %140
  %vm142 = vcmp.lt.s32.totalorder %v114, 16
  %v143 = vsel %vm142, %v139, %v141
  %v144 = vsel %vm142, %v137, %v139
  %v145 = vsel %vm142, %v135, %v137
  %v146 = vsel %vm142, %v141, %v135
  %v147 = vperm.slane %v34, 1
  %v148 = vperm.slane %v35, 1
  %v149 = vperm.slane %v36, 1
  %v150 = vperm.slane %v37, 1
  %v151 = vmul.f32 %v146, %v147
  %v152 = vmul.f32 %v145, %v148
  %v153 = vmul.f32 %v144, %v149
  %v154 = vmul.f32 %v143, %v150
  %v155 = vpack.c.bf16 %v151, %v151
  %v156 = vpack.c.bf16 %v152, %v152
  %v157 = vpack.c.bf16 %v153, %v153
  %v158 = vpack.c.bf16 %v154, %v154
  %s159 = scalar_lea.vmem %s1, 4
  %v160 = vld [vmem:[%s159] sm:$0xf]
  %v161 = vpack.c.bf16 %v160, %v160
  %vm162 = vcmask 31744
  %v164 = vsel %vm162, %v161, 0
  %vm166 = vcmask 1041408
  %v168 = vsel %vm166, %v155, 0
  %v171 = vsel %vm166, %v156, 0
  %v174 = vsel %vm166, %v157, 0
  %v177 = vsel %vm166, %v158, 0
  %179 = vmatpush.bf16.msra.mxu0 0
  %180 = vmatpush.bf16.msra.mxu0 0
  %181 = vmatpush.bf16.msra.mxu0 0
  %182 = vmatpush.bf16.msra.mxu0 0
  %183 = vmatpush.bf16.msra.mxu0 0
  %184 = vmatpush.bf16.msra.mxu0 0
  %185 = vmatpush.bf16.msra.mxu0 0
  %186 = vmatpush.bf16.msra.mxu0 %v168
  %187 = vmatmul.bf16.gmra.mxu0 %v164
  %v188 = vpop.f32.mrf.mxu0
  %v189 = vadd.f32 0.0, %v188
  %v190 = vpop.f32.mrf.mxu0
  %191 = vdwg.mxu0
  %192 = vmatpush.bf16.msra.mxu0 0
  %193 = vmatpush.bf16.msra.mxu0 0
  %194 = vmatpush.bf16.msra.mxu0 0
  %195 = vmatpush.bf16.msra.mxu0 0
  %196 = vmatpush.bf16.msra.mxu0 0
  %197 = vmatpush.bf16.msra.mxu0 0
  %198 = vmatpush.bf16.msra.mxu0 0
  %199 = vmatpush.bf16.msra.mxu0 %v171
  %200 = vmatmul.bf16.gmra.mxu0 %v164
  %v201 = vpop.f32.mrf.mxu0
  %v202 = vadd.f32 0.0, %v201
  %v203 = vpop.f32.mrf.mxu0
  %204 = vdwg.mxu0
  %205 = vmatpush.bf16.msra.mxu0 0
  %206 = vmatpush.bf16.msra.mxu0 0
  %207 = vmatpush.bf16.msra.mxu0 0
  %208 = vmatpush.bf16.msra.mxu0 0
  %209 = vmatpush.bf16.msra.mxu0 0
  %210 = vmatpush.bf16.msra.mxu0 0
  %211 = vmatpush.bf16.msra.mxu0 0
  %212 = vmatpush.bf16.msra.mxu0 %v174
  %213 = vmatmul.bf16.gmra.mxu0 %v164
  %v214 = vpop.f32.mrf.mxu0
  %v215 = vadd.f32 0.0, %v214
  %v216 = vpop.f32.mrf.mxu0
  %217 = vdwg.mxu0
  %218 = vmatpush.bf16.msra.mxu0 0
  %219 = vmatpush.bf16.msra.mxu0 0
  %220 = vmatpush.bf16.msra.mxu0 0
  %221 = vmatpush.bf16.msra.mxu0 0
  %222 = vmatpush.bf16.msra.mxu0 0
  %223 = vmatpush.bf16.msra.mxu0 0
  %224 = vmatpush.bf16.msra.mxu0 0
  %225 = vmatpush.bf16.msra.mxu0 %v177
  %226 = vmatmul.bf16.gmra.mxu0 %v164
  %v227 = vpop.f32.mrf.mxu0
  %v228 = vadd.f32 0.0, %v227
  %v229 = vpop.f32.mrf.mxu0
  %230 = vdwg.mxu0
  %v232 = vsel %vm162, %v133, 0
  %v235 = vsel %vm166, %v128, 0
  %v238 = vsel %vm166, %v129, 0
  %v241 = vsel %vm166, %v130, 0
  %v244 = vsel %vm166, %v131, 0
  %246 = vmatpush.bf16.msra.mxu0 0
  %247 = vmatpush.bf16.msra.mxu0 0
  %248 = vmatpush.bf16.msra.mxu0 0
  %249 = vmatpush.bf16.msra.mxu0 0
  %250 = vmatpush.bf16.msra.mxu0 0
  %251 = vmatpush.bf16.msra.mxu0 0
  %252 = vmatpush.bf16.msra.mxu0 0
  %253 = vmatpush.bf16.msra.mxu0 %v235
  %254 = vmatmul.bf16.gmra.mxu0 %v232
  %v255 = vpop.f32.mrf.mxu0
  %v256 = vadd.f32 %v189, %v255
  %v257 = vpop.f32.mrf.mxu0
  %258 = vdwg.mxu0
  %259 = vmatpush.bf16.msra.mxu0 0
  %260 = vmatpush.bf16.msra.mxu0 0
  %261 = vmatpush.bf16.msra.mxu0 0
  %262 = vmatpush.bf16.msra.mxu0 0
  %263 = vmatpush.bf16.msra.mxu0 0
  %264 = vmatpush.bf16.msra.mxu0 0
  %265 = vmatpush.bf16.msra.mxu0 0
  %266 = vmatpush.bf16.msra.mxu0 %v238
  %267 = vmatmul.bf16.gmra.mxu0 %v232
  %v268 = vpop.f32.mrf.mxu0
  %v269 = vadd.f32 %v202, %v268
  %v270 = vpop.f32.mrf.mxu0
  %271 = vdwg.mxu0
  %272 = vmatpush.bf16.msra.mxu0 0
  %273 = vmatpush.bf16.msra.mxu0 0
  %274 = vmatpush.bf16.msra.mxu0 0
  %275 = vmatpush.bf16.msra.mxu0 0
  %276 = vmatpush.bf16.msra.mxu0 0
  %277 = vmatpush.bf16.msra.mxu0 0
  %278 = vmatpush.bf16.msra.mxu0 0
  %279 = vmatpush.bf16.msra.mxu0 %v241
  %280 = vmatmul.bf16.gmra.mxu0 %v232
  %v281 = vpop.f32.mrf.mxu0
  %v282 = vadd.f32 %v215, %v281
  %v283 = vpop.f32.mrf.mxu0
  %284 = vdwg.mxu0
  %285 = vmatpush.bf16.msra.mxu0 0
  %286 = vmatpush.bf16.msra.mxu0 0
  %287 = vmatpush.bf16.msra.mxu0 0
  %288 = vmatpush.bf16.msra.mxu0 0
  %289 = vmatpush.bf16.msra.mxu0 0
  %290 = vmatpush.bf16.msra.mxu0 0
  %291 = vmatpush.bf16.msra.mxu0 0
  %292 = vmatpush.bf16.msra.mxu0 %v244
  %293 = vmatmul.bf16.gmra.mxu0 %v232
  %v294 = vpop.f32.mrf.mxu0
  %v295 = vadd.f32 %v228, %v294
  %v296 = vpop.f32.mrf.mxu0
  %297 = vdwg.mxu0
  %298 = vrot.lane.b32.xlu0 %v101, 15
  %v299 = vpop.permute.xlu0 %298
  %300 = vrot.lane.b32.xlu0 %v102, 15
  %v301 = vpop.permute.xlu0 %300
  %302 = vrot.lane.b32.xlu0 %v103, 15
  %v303 = vpop.permute.xlu0 %302
  %304 = vrot.lane.b32.xlu0 %v104, 15
  %v305 = vpop.permute.xlu0 %304
  %vm306 = vcmp.lt.s32.totalorder %v114, 15
  %v307 = vsel %vm306, %v303, %v305
  %v308 = vsel %vm306, %v301, %v303
  %v309 = vsel %vm306, %v299, %v301
  %v310 = vsel %vm306, %v305, %v299
  %v311 = vperm.slane %v34, 2
  %v312 = vperm.slane %v35, 2
  %v313 = vperm.slane %v36, 2
  %v314 = vperm.slane %v37, 2
  %v315 = vmul.f32 %v310, %v311
  %v316 = vmul.f32 %v309, %v312
  %v317 = vmul.f32 %v308, %v313
  %v318 = vmul.f32 %v307, %v314
  %v319 = vpack.c.bf16 %v315, %v315
  %v320 = vpack.c.bf16 %v316, %v316
  %v321 = vpack.c.bf16 %v317, %v317
  %v322 = vpack.c.bf16 %v318, %v318
  %s323 = scalar_lea.vmem %s1, 8
  %v324 = vld [vmem:[%s323] sm:$0xf]
  %v325 = vpack.c.bf16 %v324, %v324
  %v327 = vsel %vm162, %v325, 0
  %v330 = vsel %vm166, %v319, 0
  %v333 = vsel %vm166, %v320, 0
  %v336 = vsel %vm166, %v321, 0
  %v339 = vsel %vm166, %v322, 0
  %341 = vmatpush.bf16.msra.mxu0 0
  %342 = vmatpush.bf16.msra.mxu0 0
  %343 = vmatpush.bf16.msra.mxu0 0
  %344 = vmatpush.bf16.msra.mxu0 0
  %345 = vmatpush.bf16.msra.mxu0 0
  %346 = vmatpush.bf16.msra.mxu0 0
  %347 = vmatpush.bf16.msra.mxu0 0
  %348 = vmatpush.bf16.msra.mxu0 %v330
  %349 = vmatmul.bf16.gmra.mxu0 %v327
  %v350 = vpop.f32.mrf.mxu0
  %v351 = vadd.f32 0.0, %v350
  %v352 = vpop.f32.mrf.mxu0
  %353 = vdwg.mxu0
  %354 = vmatpush.bf16.msra.mxu0 0
  %355 = vmatpush.bf16.msra.mxu0 0
  %356 = vmatpush.bf16.msra.mxu0 0
  %357 = vmatpush.bf16.msra.mxu0 0
  %358 = vmatpush.bf16.msra.mxu0 0
  %359 = vmatpush.bf16.msra.mxu0 0
  %360 = vmatpush.bf16.msra.mxu0 0
  %361 = vmatpush.bf16.msra.mxu0 %v333
  %362 = vmatmul.bf16.gmra.mxu0 %v327
  %v363 = vpop.f32.mrf.mxu0
  %v364 = vadd.f32 0.0, %v363
  %v365 = vpop.f32.mrf.mxu0
  %366 = vdwg.mxu0
  %367 = vmatpush.bf16.msra.mxu0 0
  %368 = vmatpush.bf16.msra.mxu0 0
  %369 = vmatpush.bf16.msra.mxu0 0
  %370 = vmatpush.bf16.msra.mxu0 0
  %371 = vmatpush.bf16.msra.mxu0 0
  %372 = vmatpush.bf16.msra.mxu0 0
  %373 = vmatpush.bf16.msra.mxu0 0
  %374 = vmatpush.bf16.msra.mxu0 %v336
  %375 = vmatmul.bf16.gmra.mxu0 %v327
  %v376 = vpop.f32.mrf.mxu0
  %v377 = vadd.f32 0.0, %v376
  %v378 = vpop.f32.mrf.mxu0
  %379 = vdwg.mxu0
  %380 = vmatpush.bf16.msra.mxu0 0
  %381 = vmatpush.bf16.msra.mxu0 0
  %382 = vmatpush.bf16.msra.mxu0 0
  %383 = vmatpush.bf16.msra.mxu0 0
  %384 = vmatpush.bf16.msra.mxu0 0
  %385 = vmatpush.bf16.msra.mxu0 0
  %386 = vmatpush.bf16.msra.mxu0 0
  %387 = vmatpush.bf16.msra.mxu0 %v339
  %388 = vmatmul.bf16.gmra.mxu0 %v327
  %v389 = vpop.f32.mrf.mxu0
  %v390 = vadd.f32 0.0, %v389
  %v391 = vpop.f32.mrf.mxu0
  %392 = vdwg.mxu0
  %v393 = vadd.f32 %v256, %v351
  %v394 = vadd.f32 %v269, %v364
  %v395 = vadd.f32 %v282, %v377
  %v396 = vadd.f32 %v295, %v390
  %397 = vrot.lane.b32.xlu0 %v101, 1
  %v398 = vpop.permute.xlu0 %397
  %399 = vrot.lane.b32.xlu0 %v102, 1
  %v400 = vpop.permute.xlu0 %399
  %401 = vrot.lane.b32.xlu0 %v103, 1
  %v402 = vpop.permute.xlu0 %401
  %403 = vrot.lane.b32.xlu0 %v104, 1
  %v404 = vpop.permute.xlu0 %403
  %vm405 = vcmp.lt.s32.totalorder %v114, 1
  %v406 = vsel %vm405, %v402, %v404
  %v407 = vsel %vm405, %v400, %v402
  %v408 = vsel %vm405, %v398, %v400
  %v409 = vsel %vm405, %v404, %v398
  %v410 = vperm.slane %v34, 3
  %v411 = vperm.slane %v35, 3
  %v412 = vperm.slane %v36, 3
  %v413 = vperm.slane %v37, 3
  %v414 = vmul.f32 %v409, %v410
  %v415 = vmul.f32 %v408, %v411
  %v416 = vmul.f32 %v407, %v412
  %v417 = vmul.f32 %v406, %v413
  %v418 = vpack.c.bf16 %v414, %v414
  %v419 = vpack.c.bf16 %v415, %v415
  %v420 = vpack.c.bf16 %v416, %v416
  %v421 = vpack.c.bf16 %v417, %v417
  %s422 = scalar_lea.vmem %s1, 12
  %v423 = vld [vmem:[%s422] sm:$0xf]
  %v424 = vpack.c.bf16 %v423, %v423
  %v426 = vsel %vm162, %v424, 0
  %v429 = vsel %vm166, %v418, 0
  %v432 = vsel %vm166, %v419, 0
  %v435 = vsel %vm166, %v420, 0
  %v438 = vsel %vm166, %v421, 0
  %440 = vmatpush.bf16.msra.mxu0 0
  %441 = vmatpush.bf16.msra.mxu0 0
  %442 = vmatpush.bf16.msra.mxu0 0
  %443 = vmatpush.bf16.msra.mxu0 0
  %444 = vmatpush.bf16.msra.mxu0 0
  %445 = vmatpush.bf16.msra.mxu0 0
  %446 = vmatpush.bf16.msra.mxu0 0
  %447 = vmatpush.bf16.msra.mxu0 %v429
  %448 = vmatmul.bf16.gmra.mxu0 %v426
  %v449 = vpop.f32.mrf.mxu0
  %v450 = vadd.f32 0.0, %v449
  %v451 = vpop.f32.mrf.mxu0
  %452 = vdwg.mxu0
  %453 = vmatpush.bf16.msra.mxu0 0
  %454 = vmatpush.bf16.msra.mxu0 0
  %455 = vmatpush.bf16.msra.mxu0 0
  %456 = vmatpush.bf16.msra.mxu0 0
  %457 = vmatpush.bf16.msra.mxu0 0
  %458 = vmatpush.bf16.msra.mxu0 0
  %459 = vmatpush.bf16.msra.mxu0 0
  %460 = vmatpush.bf16.msra.mxu0 %v432
  %461 = vmatmul.bf16.gmra.mxu0 %v426
  %v462 = vpop.f32.mrf.mxu0
  %v463 = vadd.f32 0.0, %v462
  %v464 = vpop.f32.mrf.mxu0
  %465 = vdwg.mxu0
  %466 = vmatpush.bf16.msra.mxu0 0
  %467 = vmatpush.bf16.msra.mxu0 0
  %468 = vmatpush.bf16.msra.mxu0 0
  %469 = vmatpush.bf16.msra.mxu0 0
  %470 = vmatpush.bf16.msra.mxu0 0
  %471 = vmatpush.bf16.msra.mxu0 0
  %472 = vmatpush.bf16.msra.mxu0 0
  %473 = vmatpush.bf16.msra.mxu0 %v435
  %474 = vmatmul.bf16.gmra.mxu0 %v426
  %v475 = vpop.f32.mrf.mxu0
  %v476 = vadd.f32 0.0, %v475
  %v477 = vpop.f32.mrf.mxu0
  %478 = vdwg.mxu0
  %479 = vmatpush.bf16.msra.mxu0 0
  %480 = vmatpush.bf16.msra.mxu0 0
  %481 = vmatpush.bf16.msra.mxu0 0
  %482 = vmatpush.bf16.msra.mxu0 0
  %483 = vmatpush.bf16.msra.mxu0 0
  %484 = vmatpush.bf16.msra.mxu0 0
  %485 = vmatpush.bf16.msra.mxu0 0
  %486 = vmatpush.bf16.msra.mxu0 %v438
  %487 = vmatmul.bf16.gmra.mxu0 %v426
  %v488 = vpop.f32.mrf.mxu0
  %v489 = vadd.f32 0.0, %v488
  %v490 = vpop.f32.mrf.mxu0
  %491 = vdwg.mxu0
  %v492 = vadd.f32 %v393, %v450
  %v493 = vadd.f32 %v394, %v463
  %v494 = vadd.f32 %v395, %v476
  %v495 = vadd.f32 %v396, %v489
  %v496 = vperm.slane %v34, 4
  %v497 = vperm.slane %v35, 4
  %v498 = vperm.slane %v36, 4
  %v499 = vperm.slane %v37, 4
  %v500 = vmul.f32 %v101, %v496
  %v501 = vmul.f32 %v102, %v497
  %v502 = vmul.f32 %v103, %v498
  %v503 = vmul.f32 %v104, %v499
  %v504 = vpack.c.bf16 %v500, %v500
  %v505 = vpack.c.bf16 %v501, %v501
  %v506 = vpack.c.bf16 %v502, %v502
  %v507 = vpack.c.bf16 %v503, %v503
  %s508 = scalar_lea.vmem %s1, 16
  %v509 = vld [vmem:[%s508] sm:$0xf]
  %v510 = vpack.c.bf16 %v509, %v509
  %v512 = vsel %vm162, %v510, 0
  %v515 = vsel %vm166, %v504, 0
  %v518 = vsel %vm166, %v505, 0
  %v521 = vsel %vm166, %v506, 0
  %v524 = vsel %vm166, %v507, 0
  %526 = vmatpush.bf16.msra.mxu0 0
  %527 = vmatpush.bf16.msra.mxu0 0
  %528 = vmatpush.bf16.msra.mxu0 0
  %529 = vmatpush.bf16.msra.mxu0 0
  %530 = vmatpush.bf16.msra.mxu0 0
  %531 = vmatpush.bf16.msra.mxu0 0
  %532 = vmatpush.bf16.msra.mxu0 0
  %533 = vmatpush.bf16.msra.mxu0 %v515
  %534 = vmatmul.bf16.gmra.mxu0 %v512
  %v535 = vpop.f32.mrf.mxu0
  %v536 = vadd.f32 0.0, %v535
  %v537 = vpop.f32.mrf.mxu0
  %538 = vdwg.mxu0
  %539 = vmatpush.bf16.msra.mxu0 0
  %540 = vmatpush.bf16.msra.mxu0 0
  %541 = vmatpush.bf16.msra.mxu0 0
  %542 = vmatpush.bf16.msra.mxu0 0
  %543 = vmatpush.bf16.msra.mxu0 0
  %544 = vmatpush.bf16.msra.mxu0 0
  %545 = vmatpush.bf16.msra.mxu0 0
  %546 = vmatpush.bf16.msra.mxu0 %v518
  %547 = vmatmul.bf16.gmra.mxu0 %v512
  %v548 = vpop.f32.mrf.mxu0
  %v549 = vadd.f32 0.0, %v548
  %v550 = vpop.f32.mrf.mxu0
  %551 = vdwg.mxu0
  %552 = vmatpush.bf16.msra.mxu0 0
  %553 = vmatpush.bf16.msra.mxu0 0
  %554 = vmatpush.bf16.msra.mxu0 0
  %555 = vmatpush.bf16.msra.mxu0 0
  %556 = vmatpush.bf16.msra.mxu0 0
  %557 = vmatpush.bf16.msra.mxu0 0
  %558 = vmatpush.bf16.msra.mxu0 0
  %559 = vmatpush.bf16.msra.mxu0 %v521
  %560 = vmatmul.bf16.gmra.mxu0 %v512
  %v561 = vpop.f32.mrf.mxu0
  %v562 = vadd.f32 0.0, %v561
  %v563 = vpop.f32.mrf.mxu0
  %564 = vdwg.mxu0
  %565 = vmatpush.bf16.msra.mxu0 0
  %566 = vmatpush.bf16.msra.mxu0 0
  %567 = vmatpush.bf16.msra.mxu0 0
  %568 = vmatpush.bf16.msra.mxu0 0
  %569 = vmatpush.bf16.msra.mxu0 0
  %570 = vmatpush.bf16.msra.mxu0 0
  %571 = vmatpush.bf16.msra.mxu0 0
  %572 = vmatpush.bf16.msra.mxu0 %v524
  %573 = vmatmul.bf16.gmra.mxu0 %v512
  %v574 = vpop.f32.mrf.mxu0
  %v575 = vadd.f32 0.0, %v574
  %v576 = vpop.f32.mrf.mxu0
  %577 = vdwg.mxu0
  %v578 = vadd.f32 %v492, %v536
  %v579 = vadd.f32 %v493, %v549
  %v580 = vadd.f32 %v494, %v562
  %v581 = vadd.f32 %v495, %v575
  %582 = vrot.lane.b32.xlu0 %v101, 127
  %v583 = vpop.permute.xlu0 %582
  %584 = vrot.lane.b32.xlu0 %v102, 127
  %v585 = vpop.permute.xlu0 %584
  %586 = vrot.lane.b32.xlu0 %v103, 127
  %v587 = vpop.permute.xlu0 %586
  %588 = vrot.lane.b32.xlu0 %v104, 127
  %v589 = vpop.permute.xlu0 %588
  %vm590 = vcmp.lt.s32.totalorder %v114, 127
  %v591 = vsel %vm590, %v587, %v589
  %v592 = vsel %vm590, %v585, %v587
  %v593 = vsel %vm590, %v583, %v585
  %v594 = vsel %vm590, %v589, %v583
  %v595 = vperm.slane %v34, 5
  %v596 = vperm.slane %v35, 5
  %v597 = vperm.slane %v36, 5
  %v598 = vperm.slane %v37, 5
  %v599 = vmul.f32 %v593, %v595
  %v600 = vmul.f32 %v592, %v596
  %v601 = vmul.f32 %v591, %v597
  %v602 = vmul.f32 %v594, %v598
  %v603 = vpack.c.bf16 %v599, %v599
  %v604 = vpack.c.bf16 %v600, %v600
  %v605 = vpack.c.bf16 %v601, %v601
  %v606 = vpack.c.bf16 %v602, %v602
  %s607 = scalar_lea.vmem %s1, 20
  %v608 = vld [vmem:[%s607] sm:$0xf]
  %v609 = vpack.c.bf16 %v608, %v608
  %v611 = vsel %vm162, %v609, 0
  %v614 = vsel %vm166, %v603, 0
  %v617 = vsel %vm166, %v604, 0
  %v620 = vsel %vm166, %v605, 0
  %v623 = vsel %vm166, %v606, 0
  %625 = vmatpush.bf16.msra.mxu0 0
  %626 = vmatpush.bf16.msra.mxu0 0
  %627 = vmatpush.bf16.msra.mxu0 0
  %628 = vmatpush.bf16.msra.mxu0 0
  %629 = vmatpush.bf16.msra.mxu0 0
  %630 = vmatpush.bf16.msra.mxu0 0
  %631 = vmatpush.bf16.msra.mxu0 0
  %632 = vmatpush.bf16.msra.mxu0 %v614
  %633 = vmatmul.bf16.gmra.mxu0 %v611
  %v634 = vpop.f32.mrf.mxu0
  %v635 = vadd.f32 0.0, %v634
  %v636 = vpop.f32.mrf.mxu0
  %637 = vdwg.mxu0
  %638 = vmatpush.bf16.msra.mxu0 0
  %639 = vmatpush.bf16.msra.mxu0 0
  %640 = vmatpush.bf16.msra.mxu0 0
  %641 = vmatpush.bf16.msra.mxu0 0
  %642 = vmatpush.bf16.msra.mxu0 0
  %643 = vmatpush.bf16.msra.mxu0 0
  %644 = vmatpush.bf16.msra.mxu0 0
  %645 = vmatpush.bf16.msra.mxu0 %v617
  %646 = vmatmul.bf16.gmra.mxu0 %v611
  %v647 = vpop.f32.mrf.mxu0
  %v648 = vadd.f32 0.0, %v647
  %v649 = vpop.f32.mrf.mxu0
  %650 = vdwg.mxu0
  %651 = vmatpush.bf16.msra.mxu0 0
  %652 = vmatpush.bf16.msra.mxu0 0
  %653 = vmatpush.bf16.msra.mxu0 0
  %654 = vmatpush.bf16.msra.mxu0 0
  %655 = vmatpush.bf16.msra.mxu0 0
  %656 = vmatpush.bf16.msra.mxu0 0
  %657 = vmatpush.bf16.msra.mxu0 0
  %658 = vmatpush.bf16.msra.mxu0 %v620
  %659 = vmatmul.bf16.gmra.mxu0 %v611
  %v660 = vpop.f32.mrf.mxu0
  %v661 = vadd.f32 0.0, %v660
  %v662 = vpop.f32.mrf.mxu0
  %663 = vdwg.mxu0
  %664 = vmatpush.bf16.msra.mxu0 0
  %665 = vmatpush.bf16.msra.mxu0 0
  %666 = vmatpush.bf16.msra.mxu0 0
  %667 = vmatpush.bf16.msra.mxu0 0
  %668 = vmatpush.bf16.msra.mxu0 0
  %669 = vmatpush.bf16.msra.mxu0 0
  %670 = vmatpush.bf16.msra.mxu0 0
  %671 = vmatpush.bf16.msra.mxu0 %v623
  %672 = vmatmul.bf16.gmra.mxu0 %v611
  %v673 = vpop.f32.mrf.mxu0
  %v674 = vadd.f32 0.0, %v673
  %v675 = vpop.f32.mrf.mxu0
  %676 = vdwg.mxu0
  %v677 = vadd.f32 %v578, %v635
  %v678 = vadd.f32 %v579, %v648
  %v679 = vadd.f32 %v580, %v661
  %v680 = vadd.f32 %v581, %v674
  %681 = vrot.lane.b32.xlu0 %v101, 113
  %v682 = vpop.permute.xlu0 %681
  %683 = vrot.lane.b32.xlu0 %v102, 113
  %v684 = vpop.permute.xlu0 %683
  %685 = vrot.lane.b32.xlu0 %v103, 113
  %v686 = vpop.permute.xlu0 %685
  %687 = vrot.lane.b32.xlu0 %v104, 113
  %v688 = vpop.permute.xlu0 %687
  %vm689 = vcmp.lt.s32.totalorder %v114, 113
  %v690 = vsel %vm689, %v686, %v688
  %v691 = vsel %vm689, %v684, %v686
  %v692 = vsel %vm689, %v682, %v684
  %v693 = vsel %vm689, %v688, %v682
  %v694 = vperm.slane %v34, 6
  %v695 = vperm.slane %v35, 6
  %v696 = vperm.slane %v36, 6
  %v697 = vperm.slane %v37, 6
  %v698 = vmul.f32 %v692, %v694
  %v699 = vmul.f32 %v691, %v695
  %v700 = vmul.f32 %v690, %v696
  %v701 = vmul.f32 %v693, %v697
  %v702 = vpack.c.bf16 %v698, %v698
  %v703 = vpack.c.bf16 %v699, %v699
  %v704 = vpack.c.bf16 %v700, %v700
  %v705 = vpack.c.bf16 %v701, %v701
  %s706 = scalar_lea.vmem %s1, 24
  %v707 = vld [vmem:[%s706] sm:$0xf]
  %v708 = vpack.c.bf16 %v707, %v707
  %v710 = vsel %vm162, %v708, 0
  %v713 = vsel %vm166, %v702, 0
  %v716 = vsel %vm166, %v703, 0
  %v719 = vsel %vm166, %v704, 0
  %v722 = vsel %vm166, %v705, 0
  %724 = vmatpush.bf16.msra.mxu0 0
  %725 = vmatpush.bf16.msra.mxu0 0
  %726 = vmatpush.bf16.msra.mxu0 0
  %727 = vmatpush.bf16.msra.mxu0 0
  %728 = vmatpush.bf16.msra.mxu0 0
  %729 = vmatpush.bf16.msra.mxu0 0
  %730 = vmatpush.bf16.msra.mxu0 0
  %731 = vmatpush.bf16.msra.mxu0 %v713
  %732 = vmatmul.bf16.gmra.mxu0 %v710
  %v733 = vpop.f32.mrf.mxu0
  %v734 = vadd.f32 0.0, %v733
  %v735 = vpop.f32.mrf.mxu0
  %736 = vdwg.mxu0
  %737 = vmatpush.bf16.msra.mxu0 0
  %738 = vmatpush.bf16.msra.mxu0 0
  %739 = vmatpush.bf16.msra.mxu0 0
  %740 = vmatpush.bf16.msra.mxu0 0
  %741 = vmatpush.bf16.msra.mxu0 0
  %742 = vmatpush.bf16.msra.mxu0 0
  %743 = vmatpush.bf16.msra.mxu0 0
  %744 = vmatpush.bf16.msra.mxu0 %v716
  %745 = vmatmul.bf16.gmra.mxu0 %v710
  %v746 = vpop.f32.mrf.mxu0
  %v747 = vadd.f32 0.0, %v746
  %v748 = vpop.f32.mrf.mxu0
  %749 = vdwg.mxu0
  %750 = vmatpush.bf16.msra.mxu0 0
  %751 = vmatpush.bf16.msra.mxu0 0
  %752 = vmatpush.bf16.msra.mxu0 0
  %753 = vmatpush.bf16.msra.mxu0 0
  %754 = vmatpush.bf16.msra.mxu0 0
  %755 = vmatpush.bf16.msra.mxu0 0
  %756 = vmatpush.bf16.msra.mxu0 0
  %757 = vmatpush.bf16.msra.mxu0 %v719
  %758 = vmatmul.bf16.gmra.mxu0 %v710
  %v759 = vpop.f32.mrf.mxu0
  %v760 = vadd.f32 0.0, %v759
  %v761 = vpop.f32.mrf.mxu0
  %762 = vdwg.mxu0
  %763 = vmatpush.bf16.msra.mxu0 0
  %764 = vmatpush.bf16.msra.mxu0 0
  %765 = vmatpush.bf16.msra.mxu0 0
  %766 = vmatpush.bf16.msra.mxu0 0
  %767 = vmatpush.bf16.msra.mxu0 0
  %768 = vmatpush.bf16.msra.mxu0 0
  %769 = vmatpush.bf16.msra.mxu0 0
  %770 = vmatpush.bf16.msra.mxu0 %v722
  %771 = vmatmul.bf16.gmra.mxu0 %v710
  %v772 = vpop.f32.mrf.mxu0
  %v773 = vadd.f32 0.0, %v772
  %v774 = vpop.f32.mrf.mxu0
  %775 = vdwg.mxu0
  %v776 = vadd.f32 %v677, %v734
  %v777 = vadd.f32 %v678, %v747
  %v778 = vadd.f32 %v679, %v760
  %v779 = vadd.f32 %v680, %v773
  %780 = vrot.lane.b32.xlu0 %v101, 112
  %v781 = vpop.permute.xlu0 %780
  %782 = vrot.lane.b32.xlu0 %v102, 112
  %v783 = vpop.permute.xlu0 %782
  %784 = vrot.lane.b32.xlu0 %v103, 112
  %v785 = vpop.permute.xlu0 %784
  %786 = vrot.lane.b32.xlu0 %v104, 112
  %v787 = vpop.permute.xlu0 %786
  %vm788 = vcmp.lt.s32.totalorder %v114, 112
  %v789 = vsel %vm788, %v785, %v787
  %v790 = vsel %vm788, %v783, %v785
  %v791 = vsel %vm788, %v781, %v783
  %v792 = vsel %vm788, %v787, %v781
  %v793 = vperm.slane %v34, 7
  %v794 = vperm.slane %v35, 7
  %v795 = vperm.slane %v36, 7
  %v796 = vperm.slane %v37, 7
  %v797 = vmul.f32 %v791, %v793
  %v798 = vmul.f32 %v790, %v794
  %v799 = vmul.f32 %v789, %v795
  %v800 = vmul.f32 %v792, %v796
  %v801 = vpack.c.bf16 %v797, %v797
  %v802 = vpack.c.bf16 %v798, %v798
  %v803 = vpack.c.bf16 %v799, %v799
  %v804 = vpack.c.bf16 %v800, %v800
  %s805 = scalar_lea.vmem %s1, 28
  %v806 = vld [vmem:[%s805] sm:$0xf]
  %v807 = vpack.c.bf16 %v806, %v806
  %v809 = vsel %vm162, %v807, 0
  %v812 = vsel %vm166, %v801, 0
  %v815 = vsel %vm166, %v802, 0
  %v818 = vsel %vm166, %v803, 0
  %v821 = vsel %vm166, %v804, 0
  %823 = vmatpush.bf16.msra.mxu0 0
  %824 = vmatpush.bf16.msra.mxu0 0
  %825 = vmatpush.bf16.msra.mxu0 0
  %826 = vmatpush.bf16.msra.mxu0 0
  %827 = vmatpush.bf16.msra.mxu0 0
  %828 = vmatpush.bf16.msra.mxu0 0
  %829 = vmatpush.bf16.msra.mxu0 0
  %830 = vmatpush.bf16.msra.mxu0 %v812
  %831 = vmatmul.bf16.gmra.mxu0 %v809
  %v832 = vpop.f32.mrf.mxu0
  %v833 = vadd.f32 0.0, %v832
  %v834 = vpop.f32.mrf.mxu0
  %835 = vdwg.mxu0
  %836 = vmatpush.bf16.msra.mxu0 0
  %837 = vmatpush.bf16.msra.mxu0 0
  %838 = vmatpush.bf16.msra.mxu0 0
  %839 = vmatpush.bf16.msra.mxu0 0
  %840 = vmatpush.bf16.msra.mxu0 0
  %841 = vmatpush.bf16.msra.mxu0 0
  %842 = vmatpush.bf16.msra.mxu0 0
  %843 = vmatpush.bf16.msra.mxu0 %v815
  %844 = vmatmul.bf16.gmra.mxu0 %v809
  %v845 = vpop.f32.mrf.mxu0
  %v846 = vadd.f32 0.0, %v845
  %v847 = vpop.f32.mrf.mxu0
  %848 = vdwg.mxu0
  %849 = vmatpush.bf16.msra.mxu0 0
  %850 = vmatpush.bf16.msra.mxu0 0
  %851 = vmatpush.bf16.msra.mxu0 0
  %852 = vmatpush.bf16.msra.mxu0 0
  %853 = vmatpush.bf16.msra.mxu0 0
  %854 = vmatpush.bf16.msra.mxu0 0
  %855 = vmatpush.bf16.msra.mxu0 0
  %856 = vmatpush.bf16.msra.mxu0 %v818
  %857 = vmatmul.bf16.gmra.mxu0 %v809
  %v858 = vpop.f32.mrf.mxu0
  %v859 = vadd.f32 0.0, %v858
  %v860 = vpop.f32.mrf.mxu0
  %861 = vdwg.mxu0
  %862 = vmatpush.bf16.msra.mxu0 0
  %863 = vmatpush.bf16.msra.mxu0 0
  %864 = vmatpush.bf16.msra.mxu0 0
  %865 = vmatpush.bf16.msra.mxu0 0
  %866 = vmatpush.bf16.msra.mxu0 0
  %867 = vmatpush.bf16.msra.mxu0 0
  %868 = vmatpush.bf16.msra.mxu0 0
  %869 = vmatpush.bf16.msra.mxu0 %v821
  %870 = vmatmul.bf16.gmra.mxu0 %v809
  %v871 = vpop.f32.mrf.mxu0
  %v872 = vadd.f32 0.0, %v871
  %v873 = vpop.f32.mrf.mxu0
  %874 = vdwg.mxu0
  %v875 = vadd.f32 %v776, %v833
  %v876 = vadd.f32 %v777, %v846
  %v877 = vadd.f32 %v778, %v859
  %v878 = vadd.f32 %v779, %v872
  %879 = vrot.lane.b32.xlu0 %v101, 111
  %v880 = vpop.permute.xlu0 %879
  %881 = vrot.lane.b32.xlu0 %v102, 111
  %v882 = vpop.permute.xlu0 %881
  %883 = vrot.lane.b32.xlu0 %v103, 111
  %v884 = vpop.permute.xlu0 %883
  %885 = vrot.lane.b32.xlu0 %v104, 111
  %v886 = vpop.permute.xlu0 %885
  %vm887 = vcmp.lt.s32.totalorder %v114, 111
  %v888 = vsel %vm887, %v884, %v886
  %v889 = vsel %vm887, %v882, %v884
  %v890 = vsel %vm887, %v880, %v882
  %v891 = vsel %vm887, %v886, %v880
  %v892 = vperm.slane %v38, 0
  %v893 = vperm.slane %v39, 0
  %v894 = vperm.slane %v40, 0
  %v895 = vperm.slane %v41, 0
  %v896 = vmul.f32 %v890, %v892
  %v897 = vmul.f32 %v889, %v893
  %v898 = vmul.f32 %v888, %v894
  %v899 = vmul.f32 %v891, %v895
  %v900 = vpack.c.bf16 %v896, %v896
  %v901 = vpack.c.bf16 %v897, %v897
  %v902 = vpack.c.bf16 %v898, %v898
  %v903 = vpack.c.bf16 %v899, %v899
  %s904 = scalar_lea.vmem %s1, 32
  %v905 = vld [vmem:[%s904] sm:$0xf]
  %v906 = vpack.c.bf16 %v905, %v905
  %v908 = vsel %vm162, %v906, 0
  %v911 = vsel %vm166, %v900, 0
  %v914 = vsel %vm166, %v901, 0
  %v917 = vsel %vm166, %v902, 0
  %v920 = vsel %vm166, %v903, 0
  %922 = vmatpush.bf16.msra.mxu0 0
  %923 = vmatpush.bf16.msra.mxu0 0
  %924 = vmatpush.bf16.msra.mxu0 0
  %925 = vmatpush.bf16.msra.mxu0 0
  %926 = vmatpush.bf16.msra.mxu0 0
  %927 = vmatpush.bf16.msra.mxu0 0
  %928 = vmatpush.bf16.msra.mxu0 0
  %929 = vmatpush.bf16.msra.mxu0 %v911
  %930 = vmatmul.bf16.gmra.mxu0 %v908
  %v931 = vpop.f32.mrf.mxu0
  %v932 = vadd.f32 0.0, %v931
  %v933 = vpop.f32.mrf.mxu0
  %934 = vdwg.mxu0
  %935 = vmatpush.bf16.msra.mxu0 0
  %936 = vmatpush.bf16.msra.mxu0 0
  %937 = vmatpush.bf16.msra.mxu0 0
  %938 = vmatpush.bf16.msra.mxu0 0
  %939 = vmatpush.bf16.msra.mxu0 0
  %940 = vmatpush.bf16.msra.mxu0 0
  %941 = vmatpush.bf16.msra.mxu0 0
  %942 = vmatpush.bf16.msra.mxu0 %v914
  %943 = vmatmul.bf16.gmra.mxu0 %v908
  %v944 = vpop.f32.mrf.mxu0
  %v945 = vadd.f32 0.0, %v944
  %v946 = vpop.f32.mrf.mxu0
  %947 = vdwg.mxu0
  %948 = vmatpush.bf16.msra.mxu0 0
  %949 = vmatpush.bf16.msra.mxu0 0
  %950 = vmatpush.bf16.msra.mxu0 0
  %951 = vmatpush.bf16.msra.mxu0 0
  %952 = vmatpush.bf16.msra.mxu0 0
  %953 = vmatpush.bf16.msra.mxu0 0
  %954 = vmatpush.bf16.msra.mxu0 0
  %955 = vmatpush.bf16.msra.mxu0 %v917
  %956 = vmatmul.bf16.gmra.mxu0 %v908
  %v957 = vpop.f32.mrf.mxu0
  %v958 = vadd.f32 0.0, %v957
  %v959 = vpop.f32.mrf.mxu0
  %960 = vdwg.mxu0
  %961 = vmatpush.bf16.msra.mxu0 0
  %962 = vmatpush.bf16.msra.mxu0 0
  %963 = vmatpush.bf16.msra.mxu0 0
  %964 = vmatpush.bf16.msra.mxu0 0
  %965 = vmatpush.bf16.msra.mxu0 0
  %966 = vmatpush.bf16.msra.mxu0 0
  %967 = vmatpush.bf16.msra.mxu0 0
  %968 = vmatpush.bf16.msra.mxu0 %v920
  %969 = vmatmul.bf16.gmra.mxu0 %v908
  %v970 = vpop.f32.mrf.mxu0
  %v971 = vadd.f32 0.0, %v970
  %v972 = vpop.f32.mrf.mxu0
  %973 = vdwg.mxu0
  %v974 = vadd.f32 %v875, %v932
  %v975 = vadd.f32 %v876, %v945
  %v976 = vadd.f32 %v877, %v958
  %v977 = vadd.f32 %v878, %v971
  %v978 = vsel %vm42, %v974, 0.0
  %v979 = vsel %vm42, %v975, 0.0
  %v980 = vadd.f32 %v978, %v979
  %v981 = vsel %vm42, %v976, 0.0
  %v982 = vadd.f32 %v980, %v981
  %v983 = vsel %vm42, %v977, 0.0
  %v984 = vadd.f32 %v982, %v983
  %985 = vadd.xlane.f32.xlu0 %v984
  %v986 = vpop.xlane.xlu0 %985
  %v987 = vmul.f32 %v986, 0.001953125
  %v988 = vsub.f32 %v974, %v987
  %v989 = vsub.f32 %v975, %v987
  %v990 = vsub.f32 %v976, %v987
  %v991 = vsub.f32 %v977, %v987
  %v992 = vmul.f32 %v988, %v988
  %v993 = vmul.f32 %v989, %v989
  %v994 = vmul.f32 %v990, %v990
  %v995 = vmul.f32 %v991, %v991
  %v996 = vsel %vm42, %v992, 0.0
  %v997 = vsel %vm42, %v993, 0.0
  %v998 = vadd.f32 %v996, %v997
  %v999 = vsel %vm42, %v994, 0.0
  %v1000 = vadd.f32 %v998, %v999
  %v1001 = vsel %vm42, %v995, 0.0
  %v1002 = vadd.f32 %v1000, %v1001
  %1003 = vadd.xlane.f32.xlu0 %v1002
  %v1004 = vpop.xlane.xlu0 %1003
  %v1005 = vmul.f32 %v1004, 0.001953125
  %v1006 = vadd.f32 %v1005, 1e-05
  %v1007 = vrsqrt.pop %v1006
  %v1008 = vmul.f32 %v1007, %v1006
  %v1009 = vmul.f32 %v1008, %v1007
  %v1010 = vmul.f32 0.5, %v1009
  %v1011 = vsub.f32 1.5, %v1010
  %v1012 = vmul.f32 %v1007, %v1011
  %vm1013 = vweird.f32 %v1006
  %vm1014 = vweird.f32 %v1007
  %vm1015 = vmor %vm1013, %vm1014
  %v1016 = vsel %vm1015, %v1007, %v1012
  %v1017 = vmul.f32 %v33, %v1016
  %1019 = vset.pattern.permute.xlu0 2
  %1020 = vperm.xlu0 %1019, %v1017
  %v1021 = vpop.permute.xlu0 %1020
  %v1023 = vmul.f32 %v988, %v1021
  %v1024 = vmul.f32 %v989, %v1021
  %v1025 = vmul.f32 %v990, %v1021
  %v1026 = vmul.f32 %v991, %v1021
  %1027 = vset.pattern.permute.xlu0 3
  %1028 = vperm.xlu0 %1027, %v33
  %v1029 = vpop.permute.xlu0 %1028
  %v1031 = vadd.f32 %v1023, %v1029
  %v1032 = vadd.f32 %v1024, %v1029
  %v1033 = vadd.f32 %v1025, %v1029
  %v1034 = vadd.f32 %v1026, %v1029
  %v1035 = vmax.f32 %v1031, 0.0
  %v1036 = vmax.f32 %v1032, 0.0
  %v1037 = vmax.f32 %v1033, 0.0
  %v1038 = vmax.f32 %v1034, 0.0
  %1039 = vrot.lane.b32.xlu0 %v1035, 17
  %v1040 = vpop.permute.xlu0 %1039
  %1041 = vrot.lane.b32.xlu0 %v1036, 17
  %v1042 = vpop.permute.xlu0 %1041
  %1043 = vrot.lane.b32.xlu0 %v1037, 17
  %v1044 = vpop.permute.xlu0 %1043
  %1045 = vrot.lane.b32.xlu0 %v1038, 17
  %v1046 = vpop.permute.xlu0 %1045
  %v1047 = vsel %vm115, %v1044, %v1046
  %v1048 = vsel %vm115, %v1042, %v1044
  %v1049 = vsel %vm115, %v1040, %v1042
  %v1050 = vsel %vm115, %v1046, %v1040
  %v1051 = vmul.f32 %v1050, %v120
  %v1052 = vmul.f32 %v1049, %v121
  %v1053 = vmul.f32 %v1048, %v122
  %v1054 = vmul.f32 %v1047, %v123
  %v1055 = vpack.c.bf16 %v1051, %v1051
  %v1056 = vpack.c.bf16 %v1052, %v1052
  %v1057 = vpack.c.bf16 %v1053, %v1053
  %v1058 = vpack.c.bf16 %v1054, %v1054
  %s1059 = scalar_lea.vmem %s1, 36
  %v1060 = vld [vmem:[%s1059] sm:$0xf]
  %v1061 = vpack.c.bf16 %v1060, %v1060
  %1062 = vrot.lane.b32.xlu0 %v1035, 16
  %v1063 = vpop.permute.xlu0 %1062
  %1064 = vrot.lane.b32.xlu0 %v1036, 16
  %v1065 = vpop.permute.xlu0 %1064
  %1066 = vrot.lane.b32.xlu0 %v1037, 16
  %v1067 = vpop.permute.xlu0 %1066
  %1068 = vrot.lane.b32.xlu0 %v1038, 16
  %v1069 = vpop.permute.xlu0 %1068
  %v1070 = vsel %vm142, %v1067, %v1069
  %v1071 = vsel %vm142, %v1065, %v1067
  %v1072 = vsel %vm142, %v1063, %v1065
  %v1073 = vsel %vm142, %v1069, %v1063
  %v1074 = vmul.f32 %v1073, %v147
  %v1075 = vmul.f32 %v1072, %v148
  %v1076 = vmul.f32 %v1071, %v149
  %v1077 = vmul.f32 %v1070, %v150
  %v1078 = vpack.c.bf16 %v1074, %v1074
  %v1079 = vpack.c.bf16 %v1075, %v1075
  %v1080 = vpack.c.bf16 %v1076, %v1076
  %v1081 = vpack.c.bf16 %v1077, %v1077
  %s1082 = scalar_lea.vmem %s1, 40
  %v1083 = vld [vmem:[%s1082] sm:$0xf]
  %v1084 = vpack.c.bf16 %v1083, %v1083
  %v1086 = vsel %vm162, %v1084, 0
  %v1089 = vsel %vm166, %v1078, 0
  %v1092 = vsel %vm166, %v1079, 0
  %v1095 = vsel %vm166, %v1080, 0
  %v1098 = vsel %vm166, %v1081, 0
  %1100 = vmatpush.bf16.msra.mxu0 0
  %1101 = vmatpush.bf16.msra.mxu0 0
  %1102 = vmatpush.bf16.msra.mxu0 0
  %1103 = vmatpush.bf16.msra.mxu0 0
  %1104 = vmatpush.bf16.msra.mxu0 0
  %1105 = vmatpush.bf16.msra.mxu0 0
  %1106 = vmatpush.bf16.msra.mxu0 0
  %1107 = vmatpush.bf16.msra.mxu0 %v1089
  %1108 = vmatmul.bf16.gmra.mxu0 %v1086
  %v1109 = vpop.f32.mrf.mxu0
  %v1110 = vadd.f32 0.0, %v1109
  %v1111 = vpop.f32.mrf.mxu0
  %1112 = vdwg.mxu0
  %1113 = vmatpush.bf16.msra.mxu0 0
  %1114 = vmatpush.bf16.msra.mxu0 0
  %1115 = vmatpush.bf16.msra.mxu0 0
  %1116 = vmatpush.bf16.msra.mxu0 0
  %1117 = vmatpush.bf16.msra.mxu0 0
  %1118 = vmatpush.bf16.msra.mxu0 0
  %1119 = vmatpush.bf16.msra.mxu0 0
  %1120 = vmatpush.bf16.msra.mxu0 %v1092
  %1121 = vmatmul.bf16.gmra.mxu0 %v1086
  %v1122 = vpop.f32.mrf.mxu0
  %v1123 = vadd.f32 0.0, %v1122
  %v1124 = vpop.f32.mrf.mxu0
  %1125 = vdwg.mxu0
  %1126 = vmatpush.bf16.msra.mxu0 0
  %1127 = vmatpush.bf16.msra.mxu0 0
  %1128 = vmatpush.bf16.msra.mxu0 0
  %1129 = vmatpush.bf16.msra.mxu0 0
  %1130 = vmatpush.bf16.msra.mxu0 0
  %1131 = vmatpush.bf16.msra.mxu0 0
  %1132 = vmatpush.bf16.msra.mxu0 0
  %1133 = vmatpush.bf16.msra.mxu0 %v1095
  %1134 = vmatmul.bf16.gmra.mxu0 %v1086
  %v1135 = vpop.f32.mrf.mxu0
  %v1136 = vadd.f32 0.0, %v1135
  %v1137 = vpop.f32.mrf.mxu0
  %1138 = vdwg.mxu0
  %1139 = vmatpush.bf16.msra.mxu0 0
  %1140 = vmatpush.bf16.msra.mxu0 0
  %1141 = vmatpush.bf16.msra.mxu0 0
  %1142 = vmatpush.bf16.msra.mxu0 0
  %1143 = vmatpush.bf16.msra.mxu0 0
  %1144 = vmatpush.bf16.msra.mxu0 0
  %1145 = vmatpush.bf16.msra.mxu0 0
  %1146 = vmatpush.bf16.msra.mxu0 %v1098
  %1147 = vmatmul.bf16.gmra.mxu0 %v1086
  %v1148 = vpop.f32.mrf.mxu0
  %v1149 = vadd.f32 0.0, %v1148
  %v1150 = vpop.f32.mrf.mxu0
  %1151 = vdwg.mxu0
  %v1153 = vsel %vm162, %v1061, 0
  %v1156 = vsel %vm166, %v1055, 0
  %v1159 = vsel %vm166, %v1056, 0
  %v1162 = vsel %vm166, %v1057, 0
  %v1165 = vsel %vm166, %v1058, 0
  %1167 = vmatpush.bf16.msra.mxu0 0
  %1168 = vmatpush.bf16.msra.mxu0 0
  %1169 = vmatpush.bf16.msra.mxu0 0
  %1170 = vmatpush.bf16.msra.mxu0 0
  %1171 = vmatpush.bf16.msra.mxu0 0
  %1172 = vmatpush.bf16.msra.mxu0 0
  %1173 = vmatpush.bf16.msra.mxu0 0
  %1174 = vmatpush.bf16.msra.mxu0 %v1156
  %1175 = vmatmul.bf16.gmra.mxu0 %v1153
  %v1176 = vpop.f32.mrf.mxu0
  %v1177 = vadd.f32 %v1110, %v1176
  %v1178 = vpop.f32.mrf.mxu0
  %1179 = vdwg.mxu0
  %1180 = vmatpush.bf16.msra.mxu0 0
  %1181 = vmatpush.bf16.msra.mxu0 0
  %1182 = vmatpush.bf16.msra.mxu0 0
  %1183 = vmatpush.bf16.msra.mxu0 0
  %1184 = vmatpush.bf16.msra.mxu0 0
  %1185 = vmatpush.bf16.msra.mxu0 0
  %1186 = vmatpush.bf16.msra.mxu0 0
  %1187 = vmatpush.bf16.msra.mxu0 %v1159
  %1188 = vmatmul.bf16.gmra.mxu0 %v1153
  %v1189 = vpop.f32.mrf.mxu0
  %v1190 = vadd.f32 %v1123, %v1189
  %v1191 = vpop.f32.mrf.mxu0
  %1192 = vdwg.mxu0
  %1193 = vmatpush.bf16.msra.mxu0 0
  %1194 = vmatpush.bf16.msra.mxu0 0
  %1195 = vmatpush.bf16.msra.mxu0 0
  %1196 = vmatpush.bf16.msra.mxu0 0
  %1197 = vmatpush.bf16.msra.mxu0 0
  %1198 = vmatpush.bf16.msra.mxu0 0
  %1199 = vmatpush.bf16.msra.mxu0 0
  %1200 = vmatpush.bf16.msra.mxu0 %v1162
  %1201 = vmatmul.bf16.gmra.mxu0 %v1153
  %v1202 = vpop.f32.mrf.mxu0
  %v1203 = vadd.f32 %v1136, %v1202
  %v1204 = vpop.f32.mrf.mxu0
  %1205 = vdwg.mxu0
  %1206 = vmatpush.bf16.msra.mxu0 0
  %1207 = vmatpush.bf16.msra.mxu0 0
  %1208 = vmatpush.bf16.msra.mxu0 0
  %1209 = vmatpush.bf16.msra.mxu0 0
  %1210 = vmatpush.bf16.msra.mxu0 0
  %1211 = vmatpush.bf16.msra.mxu0 0
  %1212 = vmatpush.bf16.msra.mxu0 0
  %1213 = vmatpush.bf16.msra.mxu0 %v1165
  %1214 = vmatmul.bf16.gmra.mxu0 %v1153
  %v1215 = vpop.f32.mrf.mxu0
  %v1216 = vadd.f32 %v1149, %v1215
  %v1217 = vpop.f32.mrf.mxu0
  %1218 = vdwg.mxu0
  %1219 = vrot.lane.b32.xlu0 %v1035, 15
  %v1220 = vpop.permute.xlu0 %1219
  %1221 = vrot.lane.b32.xlu0 %v1036, 15
  %v1222 = vpop.permute.xlu0 %1221
  %1223 = vrot.lane.b32.xlu0 %v1037, 15
  %v1224 = vpop.permute.xlu0 %1223
  %1225 = vrot.lane.b32.xlu0 %v1038, 15
  %v1226 = vpop.permute.xlu0 %1225
  %v1227 = vsel %vm306, %v1224, %v1226
  %v1228 = vsel %vm306, %v1222, %v1224
  %v1229 = vsel %vm306, %v1220, %v1222
  %v1230 = vsel %vm306, %v1226, %v1220
  %v1231 = vmul.f32 %v1230, %v311
  %v1232 = vmul.f32 %v1229, %v312
  %v1233 = vmul.f32 %v1228, %v313
  %v1234 = vmul.f32 %v1227, %v314
  %v1235 = vpack.c.bf16 %v1231, %v1231
  %v1236 = vpack.c.bf16 %v1232, %v1232
  %v1237 = vpack.c.bf16 %v1233, %v1233
  %v1238 = vpack.c.bf16 %v1234, %v1234
  %s1239 = scalar_lea.vmem %s1, 44
  %v1240 = vld [vmem:[%s1239] sm:$0xf]
  %v1241 = vpack.c.bf16 %v1240, %v1240
  %v1243 = vsel %vm162, %v1241, 0
  %v1246 = vsel %vm166, %v1235, 0
  %v1249 = vsel %vm166, %v1236, 0
  %v1252 = vsel %vm166, %v1237, 0
  %v1255 = vsel %vm166, %v1238, 0
  %1257 = vmatpush.bf16.msra.mxu0 0
  %1258 = vmatpush.bf16.msra.mxu0 0
  %1259 = vmatpush.bf16.msra.mxu0 0
  %1260 = vmatpush.bf16.msra.mxu0 0
  %1261 = vmatpush.bf16.msra.mxu0 0
  %1262 = vmatpush.bf16.msra.mxu0 0
  %1263 = vmatpush.bf16.msra.mxu0 0
  %1264 = vmatpush.bf16.msra.mxu0 %v1246
  %1265 = vmatmul.bf16.gmra.mxu0 %v1243
  %v1266 = vpop.f32.mrf.mxu0
  %v1267 = vadd.f32 0.0, %v1266
  %v1268 = vpop.f32.mrf.mxu0
  %1269 = vdwg.mxu0
  %1270 = vmatpush.bf16.msra.mxu0 0
  %1271 = vmatpush.bf16.msra.mxu0 0
  %1272 = vmatpush.bf16.msra.mxu0 0
  %1273 = vmatpush.bf16.msra.mxu0 0
  %1274 = vmatpush.bf16.msra.mxu0 0
  %1275 = vmatpush.bf16.msra.mxu0 0
  %1276 = vmatpush.bf16.msra.mxu0 0
  %1277 = vmatpush.bf16.msra.mxu0 %v1249
  %1278 = vmatmul.bf16.gmra.mxu0 %v1243
  %v1279 = vpop.f32.mrf.mxu0
  %v1280 = vadd.f32 0.0, %v1279
  %v1281 = vpop.f32.mrf.mxu0
  %1282 = vdwg.mxu0
  %1283 = vmatpush.bf16.msra.mxu0 0
  %1284 = vmatpush.bf16.msra.mxu0 0
  %1285 = vmatpush.bf16.msra.mxu0 0
  %1286 = vmatpush.bf16.msra.mxu0 0
  %1287 = vmatpush.bf16.msra.mxu0 0
  %1288 = vmatpush.bf16.msra.mxu0 0
  %1289 = vmatpush.bf16.msra.mxu0 0
  %1290 = vmatpush.bf16.msra.mxu0 %v1252
  %1291 = vmatmul.bf16.gmra.mxu0 %v1243
  %v1292 = vpop.f32.mrf.mxu0
  %v1293 = vadd.f32 0.0, %v1292
  %v1294 = vpop.f32.mrf.mxu0
  %1295 = vdwg.mxu0
  %1296 = vmatpush.bf16.msra.mxu0 0
  %1297 = vmatpush.bf16.msra.mxu0 0
  %1298 = vmatpush.bf16.msra.mxu0 0
  %1299 = vmatpush.bf16.msra.mxu0 0
  %1300 = vmatpush.bf16.msra.mxu0 0
  %1301 = vmatpush.bf16.msra.mxu0 0
  %1302 = vmatpush.bf16.msra.mxu0 0
  %1303 = vmatpush.bf16.msra.mxu0 %v1255
  %1304 = vmatmul.bf16.gmra.mxu0 %v1243
  %v1305 = vpop.f32.mrf.mxu0
  %v1306 = vadd.f32 0.0, %v1305
  %v1307 = vpop.f32.mrf.mxu0
  %1308 = vdwg.mxu0
  %v1309 = vadd.f32 %v1177, %v1267
  %v1310 = vadd.f32 %v1190, %v1280
  %v1311 = vadd.f32 %v1203, %v1293
  %v1312 = vadd.f32 %v1216, %v1306
  %1313 = vrot.lane.b32.xlu0 %v1035, 1
  %v1314 = vpop.permute.xlu0 %1313
  %1315 = vrot.lane.b32.xlu0 %v1036, 1
  %v1316 = vpop.permute.xlu0 %1315
  %1317 = vrot.lane.b32.xlu0 %v1037, 1
  %v1318 = vpop.permute.xlu0 %1317
  %1319 = vrot.lane.b32.xlu0 %v1038, 1
  %v1320 = vpop.permute.xlu0 %1319
  %v1321 = vsel %vm405, %v1318, %v1320
  %v1322 = vsel %vm405, %v1316, %v1318
  %v1323 = vsel %vm405, %v1314, %v1316
  %v1324 = vsel %vm405, %v1320, %v1314
  %v1325 = vmul.f32 %v1324, %v410
  %v1326 = vmul.f32 %v1323, %v411
  %v1327 = vmul.f32 %v1322, %v412
  %v1328 = vmul.f32 %v1321, %v413
  %v1329 = vpack.c.bf16 %v1325, %v1325
  %v1330 = vpack.c.bf16 %v1326, %v1326
  %v1331 = vpack.c.bf16 %v1327, %v1327
  %v1332 = vpack.c.bf16 %v1328, %v1328
  %s1333 = scalar_lea.vmem %s1, 48
  %v1334 = vld [vmem:[%s1333] sm:$0xf]
  %v1335 = vpack.c.bf16 %v1334, %v1334
  %v1337 = vsel %vm162, %v1335, 0
  %v1340 = vsel %vm166, %v1329, 0
  %v1343 = vsel %vm166, %v1330, 0
  %v1346 = vsel %vm166, %v1331, 0
  %v1349 = vsel %vm166, %v1332, 0
  %1351 = vmatpush.bf16.msra.mxu0 0
  %1352 = vmatpush.bf16.msra.mxu0 0
  %1353 = vmatpush.bf16.msra.mxu0 0
  %1354 = vmatpush.bf16.msra.mxu0 0
  %1355 = vmatpush.bf16.msra.mxu0 0
  %1356 = vmatpush.bf16.msra.mxu0 0
  %1357 = vmatpush.bf16.msra.mxu0 0
  %1358 = vmatpush.bf16.msra.mxu0 %v1340
  %1359 = vmatmul.bf16.gmra.mxu0 %v1337
  %v1360 = vpop.f32.mrf.mxu0
  %v1361 = vadd.f32 0.0, %v1360
  %v1362 = vpop.f32.mrf.mxu0
  %1363 = vdwg.mxu0
  %1364 = vmatpush.bf16.msra.mxu0 0
  %1365 = vmatpush.bf16.msra.mxu0 0
  %1366 = vmatpush.bf16.msra.mxu0 0
  %1367 = vmatpush.bf16.msra.mxu0 0
  %1368 = vmatpush.bf16.msra.mxu0 0
  %1369 = vmatpush.bf16.msra.mxu0 0
  %1370 = vmatpush.bf16.msra.mxu0 0
  %1371 = vmatpush.bf16.msra.mxu0 %v1343
  %1372 = vmatmul.bf16.gmra.mxu0 %v1337
  %v1373 = vpop.f32.mrf.mxu0
  %v1374 = vadd.f32 0.0, %v1373
  %v1375 = vpop.f32.mrf.mxu0
  %1376 = vdwg.mxu0
  %1377 = vmatpush.bf16.msra.mxu0 0
  %1378 = vmatpush.bf16.msra.mxu0 0
  %1379 = vmatpush.bf16.msra.mxu0 0
  %1380 = vmatpush.bf16.msra.mxu0 0
  %1381 = vmatpush.bf16.msra.mxu0 0
  %1382 = vmatpush.bf16.msra.mxu0 0
  %1383 = vmatpush.bf16.msra.mxu0 0
  %1384 = vmatpush.bf16.msra.mxu0 %v1346
  %1385 = vmatmul.bf16.gmra.mxu0 %v1337
  %v1386 = vpop.f32.mrf.mxu0
  %v1387 = vadd.f32 0.0, %v1386
  %v1388 = vpop.f32.mrf.mxu0
  %1389 = vdwg.mxu0
  %1390 = vmatpush.bf16.msra.mxu0 0
  %1391 = vmatpush.bf16.msra.mxu0 0
  %1392 = vmatpush.bf16.msra.mxu0 0
  %1393 = vmatpush.bf16.msra.mxu0 0
  %1394 = vmatpush.bf16.msra.mxu0 0
  %1395 = vmatpush.bf16.msra.mxu0 0
  %1396 = vmatpush.bf16.msra.mxu0 0
  %1397 = vmatpush.bf16.msra.mxu0 %v1349
  %1398 = vmatmul.bf16.gmra.mxu0 %v1337
  %v1399 = vpop.f32.mrf.mxu0
  %v1400 = vadd.f32 0.0, %v1399
  %v1401 = vpop.f32.mrf.mxu0
  %1402 = vdwg.mxu0
  %v1403 = vadd.f32 %v1309, %v1361
  %v1404 = vadd.f32 %v1310, %v1374
  %v1405 = vadd.f32 %v1311, %v1387
  %v1406 = vadd.f32 %v1312, %v1400
  %v1407 = vmul.f32 %v1035, %v496
  %v1408 = vmul.f32 %v1036, %v497
  %v1409 = vmul.f32 %v1037, %v498
  %v1410 = vmul.f32 %v1038, %v499
  %v1411 = vpack.c.bf16 %v1407, %v1407
  %v1412 = vpack.c.bf16 %v1408, %v1408
  %v1413 = vpack.c.bf16 %v1409, %v1409
  %v1414 = vpack.c.bf16 %v1410, %v1410
  %s1415 = scalar_lea.vmem %s1, 52
  %v1416 = vld [vmem:[%s1415] sm:$0xf]
  %v1417 = vpack.c.bf16 %v1416, %v1416
  %v1419 = vsel %vm162, %v1417, 0
  %v1422 = vsel %vm166, %v1411, 0
  %v1425 = vsel %vm166, %v1412, 0
  %v1428 = vsel %vm166, %v1413, 0
  %v1431 = vsel %vm166, %v1414, 0
  %1433 = vmatpush.bf16.msra.mxu0 0
  %1434 = vmatpush.bf16.msra.mxu0 0
  %1435 = vmatpush.bf16.msra.mxu0 0
  %1436 = vmatpush.bf16.msra.mxu0 0
  %1437 = vmatpush.bf16.msra.mxu0 0
  %1438 = vmatpush.bf16.msra.mxu0 0
  %1439 = vmatpush.bf16.msra.mxu0 0
  %1440 = vmatpush.bf16.msra.mxu0 %v1422
  %1441 = vmatmul.bf16.gmra.mxu0 %v1419
  %v1442 = vpop.f32.mrf.mxu0
  %v1443 = vadd.f32 0.0, %v1442
  %v1444 = vpop.f32.mrf.mxu0
  %1445 = vdwg.mxu0
  %1446 = vmatpush.bf16.msra.mxu0 0
  %1447 = vmatpush.bf16.msra.mxu0 0
  %1448 = vmatpush.bf16.msra.mxu0 0
  %1449 = vmatpush.bf16.msra.mxu0 0
  %1450 = vmatpush.bf16.msra.mxu0 0
  %1451 = vmatpush.bf16.msra.mxu0 0
  %1452 = vmatpush.bf16.msra.mxu0 0
  %1453 = vmatpush.bf16.msra.mxu0 %v1425
  %1454 = vmatmul.bf16.gmra.mxu0 %v1419
  %v1455 = vpop.f32.mrf.mxu0
  %v1456 = vadd.f32 0.0, %v1455
  %v1457 = vpop.f32.mrf.mxu0
  %1458 = vdwg.mxu0
  %1459 = vmatpush.bf16.msra.mxu0 0
  %1460 = vmatpush.bf16.msra.mxu0 0
  %1461 = vmatpush.bf16.msra.mxu0 0
  %1462 = vmatpush.bf16.msra.mxu0 0
  %1463 = vmatpush.bf16.msra.mxu0 0
  %1464 = vmatpush.bf16.msra.mxu0 0
  %1465 = vmatpush.bf16.msra.mxu0 0
  %1466 = vmatpush.bf16.msra.mxu0 %v1428
  %1467 = vmatmul.bf16.gmra.mxu0 %v1419
  %v1468 = vpop.f32.mrf.mxu0
  %v1469 = vadd.f32 0.0, %v1468
  %v1470 = vpop.f32.mrf.mxu0
  %1471 = vdwg.mxu0
  %1472 = vmatpush.bf16.msra.mxu0 0
  %1473 = vmatpush.bf16.msra.mxu0 0
  %1474 = vmatpush.bf16.msra.mxu0 0
  %1475 = vmatpush.bf16.msra.mxu0 0
  %1476 = vmatpush.bf16.msra.mxu0 0
  %1477 = vmatpush.bf16.msra.mxu0 0
  %1478 = vmatpush.bf16.msra.mxu0 0
  %1479 = vmatpush.bf16.msra.mxu0 %v1431
  %1480 = vmatmul.bf16.gmra.mxu0 %v1419
  %v1481 = vpop.f32.mrf.mxu0
  %v1482 = vadd.f32 0.0, %v1481
  %v1483 = vpop.f32.mrf.mxu0
  %1484 = vdwg.mxu0
  %v1485 = vadd.f32 %v1403, %v1443
  %v1486 = vadd.f32 %v1404, %v1456
  %v1487 = vadd.f32 %v1405, %v1469
  %v1488 = vadd.f32 %v1406, %v1482
  %1489 = vrot.lane.b32.xlu0 %v1035, 127
  %v1490 = vpop.permute.xlu0 %1489
  %1491 = vrot.lane.b32.xlu0 %v1036, 127
  %v1492 = vpop.permute.xlu0 %1491
  %1493 = vrot.lane.b32.xlu0 %v1037, 127
  %v1494 = vpop.permute.xlu0 %1493
  %1495 = vrot.lane.b32.xlu0 %v1038, 127
  %v1496 = vpop.permute.xlu0 %1495
  %v1497 = vsel %vm590, %v1494, %v1496
  %v1498 = vsel %vm590, %v1492, %v1494
  %v1499 = vsel %vm590, %v1490, %v1492
  %v1500 = vsel %vm590, %v1496, %v1490
  %v1501 = vmul.f32 %v1499, %v595
  %v1502 = vmul.f32 %v1498, %v596
  %v1503 = vmul.f32 %v1497, %v597
  %v1504 = vmul.f32 %v1500, %v598
  %v1505 = vpack.c.bf16 %v1501, %v1501
  %v1506 = vpack.c.bf16 %v1502, %v1502
  %v1507 = vpack.c.bf16 %v1503, %v1503
  %v1508 = vpack.c.bf16 %v1504, %v1504
  %s1509 = scalar_lea.vmem %s1, 56
  %v1510 = vld [vmem:[%s1509] sm:$0xf]
  %v1511 = vpack.c.bf16 %v1510, %v1510
  %v1513 = vsel %vm162, %v1511, 0
  %v1516 = vsel %vm166, %v1505, 0
  %v1519 = vsel %vm166, %v1506, 0
  %v1522 = vsel %vm166, %v1507, 0
  %v1525 = vsel %vm166, %v1508, 0
  %1527 = vmatpush.bf16.msra.mxu0 0
  %1528 = vmatpush.bf16.msra.mxu0 0
  %1529 = vmatpush.bf16.msra.mxu0 0
  %1530 = vmatpush.bf16.msra.mxu0 0
  %1531 = vmatpush.bf16.msra.mxu0 0
  %1532 = vmatpush.bf16.msra.mxu0 0
  %1533 = vmatpush.bf16.msra.mxu0 0
  %1534 = vmatpush.bf16.msra.mxu0 %v1516
  %1535 = vmatmul.bf16.gmra.mxu0 %v1513
  %v1536 = vpop.f32.mrf.mxu0
  %v1537 = vadd.f32 0.0, %v1536
  %v1538 = vpop.f32.mrf.mxu0
  %1539 = vdwg.mxu0
  %1540 = vmatpush.bf16.msra.mxu0 0
  %1541 = vmatpush.bf16.msra.mxu0 0
  %1542 = vmatpush.bf16.msra.mxu0 0
  %1543 = vmatpush.bf16.msra.mxu0 0
  %1544 = vmatpush.bf16.msra.mxu0 0
  %1545 = vmatpush.bf16.msra.mxu0 0
  %1546 = vmatpush.bf16.msra.mxu0 0
  %1547 = vmatpush.bf16.msra.mxu0 %v1519
  %1548 = vmatmul.bf16.gmra.mxu0 %v1513
  %v1549 = vpop.f32.mrf.mxu0
  %v1550 = vadd.f32 0.0, %v1549
  %v1551 = vpop.f32.mrf.mxu0
  %1552 = vdwg.mxu0
  %1553 = vmatpush.bf16.msra.mxu0 0
  %1554 = vmatpush.bf16.msra.mxu0 0
  %1555 = vmatpush.bf16.msra.mxu0 0
  %1556 = vmatpush.bf16.msra.mxu0 0
  %1557 = vmatpush.bf16.msra.mxu0 0
  %1558 = vmatpush.bf16.msra.mxu0 0
  %1559 = vmatpush.bf16.msra.mxu0 0
  %1560 = vmatpush.bf16.msra.mxu0 %v1522
  %1561 = vmatmul.bf16.gmra.mxu0 %v1513
  %v1562 = vpop.f32.mrf.mxu0
  %v1563 = vadd.f32 0.0, %v1562
  %v1564 = vpop.f32.mrf.mxu0
  %1565 = vdwg.mxu0
  %1566 = vmatpush.bf16.msra.mxu0 0
  %1567 = vmatpush.bf16.msra.mxu0 0
  %1568 = vmatpush.bf16.msra.mxu0 0
  %1569 = vmatpush.bf16.msra.mxu0 0
  %1570 = vmatpush.bf16.msra.mxu0 0
  %1571 = vmatpush.bf16.msra.mxu0 0
  %1572 = vmatpush.bf16.msra.mxu0 0
  %1573 = vmatpush.bf16.msra.mxu0 %v1525
  %1574 = vmatmul.bf16.gmra.mxu0 %v1513
  %v1575 = vpop.f32.mrf.mxu0
  %v1576 = vadd.f32 0.0, %v1575
  %v1577 = vpop.f32.mrf.mxu0
  %1578 = vdwg.mxu0
  %v1579 = vadd.f32 %v1485, %v1537
  %v1580 = vadd.f32 %v1486, %v1550
  %v1581 = vadd.f32 %v1487, %v1563
  %v1582 = vadd.f32 %v1488, %v1576
  %1583 = vrot.lane.b32.xlu0 %v1035, 113
  %v1584 = vpop.permute.xlu0 %1583
  %1585 = vrot.lane.b32.xlu0 %v1036, 113
  %v1586 = vpop.permute.xlu0 %1585
  %1587 = vrot.lane.b32.xlu0 %v1037, 113
  %v1588 = vpop.permute.xlu0 %1587
  %1589 = vrot.lane.b32.xlu0 %v1038, 113
  %v1590 = vpop.permute.xlu0 %1589
  %v1591 = vsel %vm689, %v1588, %v1590
  %v1592 = vsel %vm689, %v1586, %v1588
  %v1593 = vsel %vm689, %v1584, %v1586
  %v1594 = vsel %vm689, %v1590, %v1584
  %v1595 = vmul.f32 %v1593, %v694
  %v1596 = vmul.f32 %v1592, %v695
  %v1597 = vmul.f32 %v1591, %v696
  %v1598 = vmul.f32 %v1594, %v697
  %v1599 = vpack.c.bf16 %v1595, %v1595
  %v1600 = vpack.c.bf16 %v1596, %v1596
  %v1601 = vpack.c.bf16 %v1597, %v1597
  %v1602 = vpack.c.bf16 %v1598, %v1598
  %s1603 = scalar_lea.vmem %s1, 60
  %v1604 = vld [vmem:[%s1603] sm:$0xf]
  %v1605 = vpack.c.bf16 %v1604, %v1604
  %v1607 = vsel %vm162, %v1605, 0
  %v1610 = vsel %vm166, %v1599, 0
  %v1613 = vsel %vm166, %v1600, 0
  %v1616 = vsel %vm166, %v1601, 0
  %v1619 = vsel %vm166, %v1602, 0
  %1621 = vmatpush.bf16.msra.mxu0 0
  %1622 = vmatpush.bf16.msra.mxu0 0
  %1623 = vmatpush.bf16.msra.mxu0 0
  %1624 = vmatpush.bf16.msra.mxu0 0
  %1625 = vmatpush.bf16.msra.mxu0 0
  %1626 = vmatpush.bf16.msra.mxu0 0
  %1627 = vmatpush.bf16.msra.mxu0 0
  %1628 = vmatpush.bf16.msra.mxu0 %v1610
  %1629 = vmatmul.bf16.gmra.mxu0 %v1607
  %v1630 = vpop.f32.mrf.mxu0
  %v1631 = vadd.f32 0.0, %v1630
  %v1632 = vpop.f32.mrf.mxu0
  %1633 = vdwg.mxu0
  %1634 = vmatpush.bf16.msra.mxu0 0
  %1635 = vmatpush.bf16.msra.mxu0 0
  %1636 = vmatpush.bf16.msra.mxu0 0
  %1637 = vmatpush.bf16.msra.mxu0 0
  %1638 = vmatpush.bf16.msra.mxu0 0
  %1639 = vmatpush.bf16.msra.mxu0 0
  %1640 = vmatpush.bf16.msra.mxu0 0
  %1641 = vmatpush.bf16.msra.mxu0 %v1613
  %1642 = vmatmul.bf16.gmra.mxu0 %v1607
  %v1643 = vpop.f32.mrf.mxu0
  %v1644 = vadd.f32 0.0, %v1643
  %v1645 = vpop.f32.mrf.mxu0
  %1646 = vdwg.mxu0
  %1647 = vmatpush.bf16.msra.mxu0 0
  %1648 = vmatpush.bf16.msra.mxu0 0
  %1649 = vmatpush.bf16.msra.mxu0 0
  %1650 = vmatpush.bf16.msra.mxu0 0
  %1651 = vmatpush.bf16.msra.mxu0 0
  %1652 = vmatpush.bf16.msra.mxu0 0
  %1653 = vmatpush.bf16.msra.mxu0 0
  %1654 = vmatpush.bf16.msra.mxu0 %v1616
  %1655 = vmatmul.bf16.gmra.mxu0 %v1607
  %v1656 = vpop.f32.mrf.mxu0
  %v1657 = vadd.f32 0.0, %v1656
  %v1658 = vpop.f32.mrf.mxu0
  %1659 = vdwg.mxu0
  %1660 = vmatpush.bf16.msra.mxu0 0
  %1661 = vmatpush.bf16.msra.mxu0 0
  %1662 = vmatpush.bf16.msra.mxu0 0
  %1663 = vmatpush.bf16.msra.mxu0 0
  %1664 = vmatpush.bf16.msra.mxu0 0
  %1665 = vmatpush.bf16.msra.mxu0 0
  %1666 = vmatpush.bf16.msra.mxu0 0
  %1667 = vmatpush.bf16.msra.mxu0 %v1619
  %1668 = vmatmul.bf16.gmra.mxu0 %v1607
  %v1669 = vpop.f32.mrf.mxu0
  %v1670 = vadd.f32 0.0, %v1669
  %v1671 = vpop.f32.mrf.mxu0
  %1672 = vdwg.mxu0
  %v1673 = vadd.f32 %v1579, %v1631
  %v1674 = vadd.f32 %v1580, %v1644
  %v1675 = vadd.f32 %v1581, %v1657
  %v1676 = vadd.f32 %v1582, %v1670
  %1677 = vrot.lane.b32.xlu0 %v1035, 112
  %v1678 = vpop.permute.xlu0 %1677
  %1679 = vrot.lane.b32.xlu0 %v1036, 112
  %v1680 = vpop.permute.xlu0 %1679
  %1681 = vrot.lane.b32.xlu0 %v1037, 112
  %v1682 = vpop.permute.xlu0 %1681
  %1683 = vrot.lane.b32.xlu0 %v1038, 112
  %v1684 = vpop.permute.xlu0 %1683
  %v1685 = vsel %vm788, %v1682, %v1684
  %v1686 = vsel %vm788, %v1680, %v1682
  %v1687 = vsel %vm788, %v1678, %v1680
  %v1688 = vsel %vm788, %v1684, %v1678
  %v1689 = vmul.f32 %v1687, %v793
  %v1690 = vmul.f32 %v1686, %v794
  %v1691 = vmul.f32 %v1685, %v795
  %v1692 = vmul.f32 %v1688, %v796
  %v1693 = vpack.c.bf16 %v1689, %v1689
  %v1694 = vpack.c.bf16 %v1690, %v1690
  %v1695 = vpack.c.bf16 %v1691, %v1691
  %v1696 = vpack.c.bf16 %v1692, %v1692
  %s1697 = scalar_lea.vmem %s1, 64
  %v1698 = vld [vmem:[%s1697] sm:$0xf]
  %v1699 = vpack.c.bf16 %v1698, %v1698
  %v1701 = vsel %vm162, %v1699, 0
  %v1704 = vsel %vm166, %v1693, 0
  %v1707 = vsel %vm166, %v1694, 0
  %v1710 = vsel %vm166, %v1695, 0
  %v1713 = vsel %vm166, %v1696, 0
  %1715 = vmatpush.bf16.msra.mxu0 0
  %1716 = vmatpush.bf16.msra.mxu0 0
  %1717 = vmatpush.bf16.msra.mxu0 0
  %1718 = vmatpush.bf16.msra.mxu0 0
  %1719 = vmatpush.bf16.msra.mxu0 0
  %1720 = vmatpush.bf16.msra.mxu0 0
  %1721 = vmatpush.bf16.msra.mxu0 0
  %1722 = vmatpush.bf16.msra.mxu0 %v1704
  %1723 = vmatmul.bf16.gmra.mxu0 %v1701
  %v1724 = vpop.f32.mrf.mxu0
  %v1725 = vadd.f32 0.0, %v1724
  %v1726 = vpop.f32.mrf.mxu0
  %1727 = vdwg.mxu0
  %1728 = vmatpush.bf16.msra.mxu0 0
  %1729 = vmatpush.bf16.msra.mxu0 0
  %1730 = vmatpush.bf16.msra.mxu0 0
  %1731 = vmatpush.bf16.msra.mxu0 0
  %1732 = vmatpush.bf16.msra.mxu0 0
  %1733 = vmatpush.bf16.msra.mxu0 0
  %1734 = vmatpush.bf16.msra.mxu0 0
  %1735 = vmatpush.bf16.msra.mxu0 %v1707
  %1736 = vmatmul.bf16.gmra.mxu0 %v1701
  %v1737 = vpop.f32.mrf.mxu0
  %v1738 = vadd.f32 0.0, %v1737
  %v1739 = vpop.f32.mrf.mxu0
  %1740 = vdwg.mxu0
  %1741 = vmatpush.bf16.msra.mxu0 0
  %1742 = vmatpush.bf16.msra.mxu0 0
  %1743 = vmatpush.bf16.msra.mxu0 0
  %1744 = vmatpush.bf16.msra.mxu0 0
  %1745 = vmatpush.bf16.msra.mxu0 0
  %1746 = vmatpush.bf16.msra.mxu0 0
  %1747 = vmatpush.bf16.msra.mxu0 0
  %1748 = vmatpush.bf16.msra.mxu0 %v1710
  %1749 = vmatmul.bf16.gmra.mxu0 %v1701
  %v1750 = vpop.f32.mrf.mxu0
  %v1751 = vadd.f32 0.0, %v1750
  %v1752 = vpop.f32.mrf.mxu0
  %1753 = vdwg.mxu0
  %1754 = vmatpush.bf16.msra.mxu0 0
  %1755 = vmatpush.bf16.msra.mxu0 0
  %1756 = vmatpush.bf16.msra.mxu0 0
  %1757 = vmatpush.bf16.msra.mxu0 0
  %1758 = vmatpush.bf16.msra.mxu0 0
  %1759 = vmatpush.bf16.msra.mxu0 0
  %1760 = vmatpush.bf16.msra.mxu0 0
  %1761 = vmatpush.bf16.msra.mxu0 %v1713
  %1762 = vmatmul.bf16.gmra.mxu0 %v1701
  %v1763 = vpop.f32.mrf.mxu0
  %v1764 = vadd.f32 0.0, %v1763
  %v1765 = vpop.f32.mrf.mxu0
  %1766 = vdwg.mxu0
  %v1767 = vadd.f32 %v1673, %v1725
  %v1768 = vadd.f32 %v1674, %v1738
  %v1769 = vadd.f32 %v1675, %v1751
  %v1770 = vadd.f32 %v1676, %v1764
  %1771 = vrot.lane.b32.xlu0 %v1035, 111
  %v1772 = vpop.permute.xlu0 %1771
  %1773 = vrot.lane.b32.xlu0 %v1036, 111
  %v1774 = vpop.permute.xlu0 %1773
  %1775 = vrot.lane.b32.xlu0 %v1037, 111
  %v1776 = vpop.permute.xlu0 %1775
  %1777 = vrot.lane.b32.xlu0 %v1038, 111
  %v1778 = vpop.permute.xlu0 %1777
  %v1779 = vsel %vm887, %v1776, %v1778
  %v1780 = vsel %vm887, %v1774, %v1776
  %v1781 = vsel %vm887, %v1772, %v1774
  %v1782 = vsel %vm887, %v1778, %v1772
  %v1783 = vmul.f32 %v1781, %v892
  %v1784 = vmul.f32 %v1780, %v893
  %v1785 = vmul.f32 %v1779, %v894
  %v1786 = vmul.f32 %v1782, %v895
  %v1787 = vpack.c.bf16 %v1783, %v1783
  %v1788 = vpack.c.bf16 %v1784, %v1784
  %v1789 = vpack.c.bf16 %v1785, %v1785
  %v1790 = vpack.c.bf16 %v1786, %v1786
  %s1791 = scalar_lea.vmem %s1, 68
  %v1792 = vld [vmem:[%s1791] sm:$0xf]
  %v1793 = vpack.c.bf16 %v1792, %v1792
  %v1795 = vsel %vm162, %v1793, 0
  %v1798 = vsel %vm166, %v1787, 0
  %v1801 = vsel %vm166, %v1788, 0
  %v1804 = vsel %vm166, %v1789, 0
  %v1807 = vsel %vm166, %v1790, 0
  %1809 = vmatpush.bf16.msra.mxu0 0
  %1810 = vmatpush.bf16.msra.mxu0 0
  %1811 = vmatpush.bf16.msra.mxu0 0
  %1812 = vmatpush.bf16.msra.mxu0 0
  %1813 = vmatpush.bf16.msra.mxu0 0
  %1814 = vmatpush.bf16.msra.mxu0 0
  %1815 = vmatpush.bf16.msra.mxu0 0
  %1816 = vmatpush.bf16.msra.mxu0 %v1798
  %1817 = vmatmul.bf16.gmra.mxu0 %v1795
  %v1818 = vpop.f32.mrf.mxu0
  %v1819 = vadd.f32 0.0, %v1818
  %v1820 = vpop.f32.mrf.mxu0
  %1821 = vdwg.mxu0
  %1822 = vmatpush.bf16.msra.mxu0 0
  %1823 = vmatpush.bf16.msra.mxu0 0
  %1824 = vmatpush.bf16.msra.mxu0 0
  %1825 = vmatpush.bf16.msra.mxu0 0
  %1826 = vmatpush.bf16.msra.mxu0 0
  %1827 = vmatpush.bf16.msra.mxu0 0
  %1828 = vmatpush.bf16.msra.mxu0 0
  %1829 = vmatpush.bf16.msra.mxu0 %v1801
  %1830 = vmatmul.bf16.gmra.mxu0 %v1795
  %v1831 = vpop.f32.mrf.mxu0
  %v1832 = vadd.f32 0.0, %v1831
  %v1833 = vpop.f32.mrf.mxu0
  %1834 = vdwg.mxu0
  %1835 = vmatpush.bf16.msra.mxu0 0
  %1836 = vmatpush.bf16.msra.mxu0 0
  %1837 = vmatpush.bf16.msra.mxu0 0
  %1838 = vmatpush.bf16.msra.mxu0 0
  %1839 = vmatpush.bf16.msra.mxu0 0
  %1840 = vmatpush.bf16.msra.mxu0 0
  %1841 = vmatpush.bf16.msra.mxu0 0
  %1842 = vmatpush.bf16.msra.mxu0 %v1804
  %1843 = vmatmul.bf16.gmra.mxu0 %v1795
  %v1844 = vpop.f32.mrf.mxu0
  %v1845 = vadd.f32 0.0, %v1844
  %v1846 = vpop.f32.mrf.mxu0
  %1847 = vdwg.mxu0
  %1848 = vmatpush.bf16.msra.mxu0 0
  %1849 = vmatpush.bf16.msra.mxu0 0
  %1850 = vmatpush.bf16.msra.mxu0 0
  %1851 = vmatpush.bf16.msra.mxu0 0
  %1852 = vmatpush.bf16.msra.mxu0 0
  %1853 = vmatpush.bf16.msra.mxu0 0
  %1854 = vmatpush.bf16.msra.mxu0 0
  %1855 = vmatpush.bf16.msra.mxu0 %v1807
  %1856 = vmatmul.bf16.gmra.mxu0 %v1795
  %v1857 = vpop.f32.mrf.mxu0
  %v1858 = vadd.f32 0.0, %v1857
  %v1859 = vpop.f32.mrf.mxu0
  %1860 = vdwg.mxu0
  %v1861 = vadd.f32 %v1767, %v1819
  %v1862 = vadd.f32 %v1768, %v1832
  %v1863 = vadd.f32 %v1769, %v1845
  %v1864 = vadd.f32 %v1770, %v1858
  %v1865 = vadd.f32 %v23, %v1861
  %v1866 = vadd.f32 %v24, %v1862
  %v1867 = vadd.f32 %v29, %v1863
  %v1868 = vadd.f32 %v30, %v1864
  %v1871 = vrot.slane %v1866, 4
  %v1872 = vsel %vm42, %v1865, %v1871
  %1874 = vst [vmem:[%s4] sm:$0xff] %v1872
  %v1877 = vrot.slane %v1868, 4
  %v1878 = vsel %vm42, %v1867, %v1877
  %s1880 = scalar_lea.vmem %s4, 8
  %1881 = vst [vmem:[%s1880] sm:$0xff] %v1878
  // Predicated region
  $region18: #{resnet_block_pallas.1} parent=0 // pred_check
    _
  $region19: #{resnet_block_pallas.1} parent=0 // pred_check_branch
    %1883 = sbr.rel (0) target = $region21
  $region20: #{resnet_block_pallas.1} parent=0 // pred_region
    _
  $region21: #{resnet_block_pallas.1} parent=0 // pred_fallthru
    _
  // Predicated region
  $region22: #{resnet_block_pallas.1} parent=0 // pred_check
    _
  $region23: #{resnet_block_pallas.1} parent=0 // pred_check_branch
    %1885 = sbr.rel (0) target = $region25
  $region24: #{resnet_block_pallas.1} parent=0 // pred_region
    _
  $region25: #{resnet_block_pallas.1} parent=0 // pred_fallthru
    _

</llo_original>
